<compile_context>
chip_gen: v5e
topology: v5e:2x2
jax: 0.10.0
libtpu: 0.0.40
codegen_flags: <defaults>
</compile_context>

<pallas_src>
import functools
import math

import jax
import jax.numpy as jnp
from jax.experimental import pallas as pl
from jax.experimental.pallas import tpu as pltpu

EPS = 1e-5
GROUPS = 32
PREC = jax.lax.Precision.HIGHEST   # only for tiny XLA-side emb GEMMs / reference


def _silu(h):
    return h * jax.nn.sigmoid(h)


def resblock_kernel(x_ref, emb_ref, m_prev_ref, m_next_ref, sc_ref, bc_ref,
                    er1_ref, eb1_ref, gn1_w_ref, gn1_b_ref, w1_ref, b1_ref,
                    er2_ref, eb2_ref, gn2_w_ref, gn2_b_ref, w2_ref, b2_ref,
                    out_ref, *, n_tile, use_res_conv):
    x = x_ref[...]                       # (in_ch, N) f32, N = Bt*L
    m_prev = m_prev_ref[...]             # (1, N): 0 where col is a sequence start
    m_next = m_next_ref[...]             # (1, N): 0 where col is a sequence end
    sc = sc_ref[...]                     # (N, Bt): 1/L within a batch block
    bc = bc_ref[...]                     # (Bt, N): one-hot broadcast back

    def dot32(a, b):
        return jnp.dot(a, b, preferred_element_type=jnp.float32)

    def block_avg(v, er, eb):
        # per-(group, batch) average of v, broadcast back to (C, N):
        # (G,C)@(C,N) -> (G,N); @(N,Bt) -> (G,Bt); (C,G)@ -> (C,Bt); @(Bt,N) -> (C,N)
        t = dot32(dot32(er, v), sc)
        return dot32(dot32(eb, t), bc)

    def group_norm(h, er_ref, eb_ref, w_ref, b_ref):
        er = er_ref[...]
        eb = eb_ref[...]
        mean = block_avg(h, er, eb)
        d = h - mean
        var = block_avg(d * d, er, eb)          # two-pass (robust) variance
        return d * jax.lax.rsqrt(var + EPS) * w_ref[...] + b_ref[...]

    def conv_operand(h, extra=None):
        # Conv1d(k=3, pad=1): prev/center/next taps stacked along channels so
        # the conv is ONE bf16 MXU matmul.  Shifts via pltpu.roll with
        # NON-NEGATIVE shifts only (+1 == x[l-1], n_tile-1 == x[l+1]); masks
        # restore zero-padding and stop leakage across batch elements folded
        # into the lane dimension.
        hp = (pltpu.roll(h, 1, axis=1) * m_prev).astype(jnp.bfloat16)           # x[l-1]
        hn = (pltpu.roll(h, n_tile - 1, axis=1) * m_next).astype(jnp.bfloat16)  # x[l+1]
        parts = [hp, h.astype(jnp.bfloat16), hn]
        if extra is not None:
            parts.append(extra.astype(jnp.bfloat16))
        return jnp.concatenate(parts, axis=0)

    # ---- block_1 ------------------------------------------------------------
    h = _silu(group_norm(x, er1_ref, eb1_ref, gn1_w_ref, gn1_b_ref))
    latent = dot32(w1_ref[...], conv_operand(h)) + b1_ref[...]

    # ---- time / class embeddings (projection precomputed outside the kernel) -
    latent = latent + emb_ref[...]

    # ---- block_2 (+ residual fused into the same matmul when 1x1 conv) -------
    # TODO(synk): nn.Dropout implemented as identity (inference-mode kernel).
    h2 = _silu(group_norm(latent, er2_ref, eb2_ref, gn2_w_ref, gn2_b_ref))
    if use_res_conv:
        out = dot32(w2_ref[...], conv_operand(h2, extra=x)) + b2_ref[...]
    else:
        out = dot32(w2_ref[...], conv_operand(h2)) + b2_ref[...] + x
    out_ref[...] = out


def _choose_tiling(B, L, max_cols=2048):
    """Pick (batch elements per tile, padded batch) so the tile lane width
    bt*L is a multiple of 128 (lane-dense loads/stores, unmasked vst)."""
    bt = max(1, 128 // math.gcd(L, 128))
    while bt * 2 * L <= max_cols and bt * 2 <= B:
        bt *= 2
    b_pad = pl.cdiv(B, bt) * bt
    return bt, b_pad


def _group_mats(C):
    """(GROUPS, C) group-average reduce and (C, GROUPS) one-hot broadcast."""
    assert C % GROUPS == 0, "GroupNorm(32, C) requires C % 32 == 0"
    gid = jnp.arange(C) // (C // GROUPS)
    er = (jnp.arange(GROUPS)[:, None] == gid[None, :]).astype(jnp.float32) / (C // GROUPS)
    eb = (gid[:, None] == jnp.arange(GROUPS)[None, :]).astype(jnp.float32)
    return er, eb


def resblock_forward(x, temb, cemb, params):
    B, in_ch, L = x.shape
    out_ch = params["conv1_w"].shape[0]
    use_res_conv = in_ch != out_ch

    bt, b_pad = _choose_tiling(B, L)     # batch elements per grid step
    n_tile = bt * L                      # multiple of 128
    n_cols = b_pad * L
    grid = (b_pad // bt,)

    # ---- XLA-side preprocessing (cheap, once per call) ------------------------
    xf = x.astype(jnp.float32)
    if b_pad != B:
        # padded columns form their own self-contained dummy batch blocks
        xf = jnp.pad(xf, ((0, b_pad - B), (0, 0), (0, 0)))
    xs = jnp.transpose(xf, (1, 0, 2)).reshape(in_ch, n_cols)          # (C, B_pad*L)

    # Hoisted SiLU -> Linear embedding projections (one batched GEMM each).
    emb = (jnp.dot(_silu(temb), params["temb_w"].T, precision=PREC) + params["temb_b"]
           + jnp.dot(_silu(cemb), params["cemb_w"].T, precision=PREC) + params["cemb_b"]
           ).astype(jnp.float32)                                       # (B, out_ch)
    if b_pad != B:
        emb = jnp.pad(emb, ((0, b_pad - B), (0, 0)))
    emb_cols = jnp.broadcast_to(emb.T[:, :, None], (out_ch, b_pad, L)).reshape(out_ch, n_cols)

    # Conv padding / batch-boundary masks and rectangular stat matrices
    # (pattern repeats per tile).
    pos = jnp.arange(n_tile) % L
    m_prev = (pos != 0).astype(jnp.float32)[None, :]                   # (1, Bt*L)
    m_next = (pos != L - 1).astype(jnp.float32)[None, :]
    bid = jnp.arange(n_tile) // L
    sc = (bid[:, None] == jnp.arange(bt)[None, :]).astype(jnp.float32) / L   # (Bt*L, Bt)
    bc = (jnp.arange(bt)[:, None] == bid[None, :]).astype(jnp.float32)       # (Bt, Bt*L)
    er1, eb1 = _group_mats(in_ch)
    er2, eb2 = _group_mats(out_ch)

    col = lambda v: v.reshape(-1, 1).astype(jnp.float32)
    stack_k3 = lambda w: jnp.transpose(w, (0, 2, 1)).reshape(w.shape[0], -1)  # (out, 3*in)

    w1_s = stack_k3(params["conv1_w"]).astype(jnp.bfloat16)            # (out, 3*in)
    w2_s = stack_k3(params["conv2_w"])                                 # (out, 3*out)
    b2_t = params["conv2_b"]
    if use_res_conv:                     # fuse the 1x1 residual into conv2's matmul
        w2_s = jnp.concatenate([w2_s, params["res_w"][:, :, 0]], axis=1)
        b2_t = b2_t + params["res_b"]
    w2_s = w2_s.astype(jnp.bfloat16)

    inputs = [
        xs, emb_cols, m_prev, m_next, sc, bc,
        er1, eb1, col(params["gn1_w"]), col(params["gn1_b"]), w1_s, col(params["conv1_b"]),
        er2, eb2, col(params["gn2_w"]), col(params["gn2_b"]), w2_s, col(b2_t),
    ]
    tiled = lambda rows: pl.BlockSpec((rows, n_tile), lambda i: (0, i))
    const = lambda a: pl.BlockSpec(a.shape, lambda i, _nd=a.ndim: (0,) * _nd)
    in_specs = [tiled(in_ch), tiled(out_ch)] + [const(a) for a in inputs[2:]]

    kernel = functools.partial(resblock_kernel, n_tile=n_tile,
                               use_res_conv=use_res_conv)

    out_cols = pl.pallas_call(
        kernel,
        out_shape=jax.ShapeDtypeStruct((out_ch, n_cols), jnp.float32),
        grid=grid,
        in_specs=in_specs,
        out_specs=pl.BlockSpec((out_ch, n_tile), lambda i: (0, i)),
        compiler_params=pltpu.CompilerParams(
            dimension_semantics=("parallel",),      # batch tiles are independent
            vmem_limit_bytes=32 * 1024 * 1024),     # explicit: portable to v7x (64 MiB phys)
    )(*inputs)

    out = jnp.transpose(out_cols.reshape(out_ch, b_pad, L), (1, 0, 2))
    return out[:B]


# ---------------------------- pure-JAX reference -----------------------------
def resblock_reference(x, temb, cemb, params):
    def gn(h, w, b):
        B, C, L = h.shape
        hg = h.reshape(B, GROUPS, (C // GROUPS) * L)
        mean = hg.mean(-1, keepdims=True)
        var = hg.var(-1, keepdims=True)
        hn = ((hg - mean) / jnp.sqrt(var + EPS)).reshape(B, C, L)
        return hn * w[None, :, None] + b[None, :, None]

    def conv1d(h, w, b, pad):
        y = jax.lax.conv_general_dilated(
            h, w, window_strides=(1,), padding=[(pad, pad)],
            dimension_numbers=("NCH", "OIH", "NCH"), precision=PREC)
        return y + b[None, :, None]

    latent = conv1d(_silu(gn(x, params["gn1_w"], params["gn1_b"])),
                    params["conv1_w"], params["conv1_b"], 1)
    latent = latent + (jnp.dot(_silu(temb), params["temb_w"].T, precision=PREC)
                       + params["temb_b"])[:, :, None]
    latent = latent + (jnp.dot(_silu(cemb), params["cemb_w"].T, precision=PREC)
                       + params["cemb_b"])[:, :, None]
    latent = conv1d(_silu(gn(latent, params["gn2_w"], params["gn2_b"])),
                    params["conv2_w"], params["conv2_b"], 1)
    if x.shape[1] != latent.shape[1]:
        res = conv1d(x, params["res_w"], params["res_b"], 0)
    else:
        res = x
    return latent + res


if __name__ == "__main__":
    B, in_ch, out_ch, L = 2, 32, 64, 16
    tdim, cdim = 48, 24

    keys = jax.random.split(jax.random.PRNGKey(0), 17)
    s = 0.1
    params = dict(
        gn1_w=1.0 + 0.05 * jax.random.normal(keys[0], (in_ch,)),
        gn1_b=0.05 * jax.random.normal(keys[1], (in_ch,)),
        conv1_w=s * jax.random.normal(keys[2], (out_ch, in_ch, 3)),
        conv1_b=s * jax.random.normal(keys[3], (out_ch,)),
        temb_w=s * jax.random.normal(keys[4], (out_ch, tdim)),
        temb_b=s * jax.random.normal(keys[5], (out_ch,)),
        cemb_w=s * jax.random.normal(keys[6], (out_ch, cdim)),
        cemb_b=s * jax.random.normal(keys[7], (out_ch,)),
        gn2_w=1.0 + 0.05 * jax.random.normal(keys[8], (out_ch,)),
        gn2_b=0.05 * jax.random.normal(keys[9], (out_ch,)),
        conv2_w=s * jax.random.normal(keys[10], (out_ch, out_ch, 3)),
        conv2_b=s * jax.random.normal(keys[11], (out_ch,)),
        res_w=s * jax.random.normal(keys[12], (out_ch, in_ch, 1)),
        res_b=s * jax.random.normal(keys[13], (out_ch,)),
    )

    x = jax.random.normal(keys[14], (B, in_ch, L), jnp.float32)
    temb = jax.random.normal(keys[15], (B, tdim), jnp.float32)
    cemb = jax.random.normal(keys[16], (B, cdim), jnp.float32)

    out = jax.block_until_ready(resblock_forward(x, temb, cemb, params))
    ref = jax.block_until_ready(resblock_reference(x, temb, cemb, params))

    assert out.shape == (B, out_ch, L)
    # conv / residual matmuls and GN stat matmuls run with bf16 MXU operands
    # (f32 accumulation) inside the kernel, so compare against the full-f32
    # reference with a relaxed tolerance (structural bugs produce errors
    # orders of magnitude larger).
    assert jnp.allclose(out, ref, atol=5e-2, rtol=5e-2), (
        f"max abs diff {jnp.max(jnp.abs(out - ref))}")

    print("KERNEL_OK")
</pallas_src>

<mosaic_0001>
module attributes {stable_mosaic.version = 11 : i64} {
  func.func @resblock_kernel(%arg0: i32, %arg1: memref<32x128xf32, #tpu.memory_space<vmem>>, %arg2: memref<64x128xf32, #tpu.memory_space<vmem>>, %arg3: memref<1x128xf32, #tpu.memory_space<vmem>>, %arg4: memref<1x128xf32, #tpu.memory_space<vmem>>, %arg5: memref<128x8xf32, #tpu.memory_space<vmem>>, %arg6: memref<8x128xf32, #tpu.memory_space<vmem>>, %arg7: memref<32x32xf32, #tpu.memory_space<vmem>>, %arg8: memref<32x32xf32, #tpu.memory_space<vmem>>, %arg9: memref<32x1xf32, #tpu.memory_space<vmem>>, %arg10: memref<32x1xf32, #tpu.memory_space<vmem>>, %arg11: memref<64x96xbf16, #tpu.memory_space<vmem>>, %arg12: memref<64x1xf32, #tpu.memory_space<vmem>>, %arg13: memref<32x64xf32, #tpu.memory_space<vmem>>, %arg14: memref<64x32xf32, #tpu.memory_space<vmem>>, %arg15: memref<64x1xf32, #tpu.memory_space<vmem>>, %arg16: memref<64x1xf32, #tpu.memory_space<vmem>>, %arg17: memref<64x224xbf16, #tpu.memory_space<vmem>>, %arg18: memref<64x1xf32, #tpu.memory_space<vmem>>, %arg19: memref<64x128xf32, #tpu.memory_space<vmem>>) attributes {dimension_semantics = [#tpu.dimension_semantics<parallel>], iteration_bounds = array<i64: 1>, scalar_prefetch = 0 : i64, scratch_operands = 0 : i64, tpu.core_type = #tpu.core_type<tc>, window_params = [{transform_indices = @transform_0, window_bounds = array<i64: 32, 128>}, {transform_indices = @transform_1, window_bounds = array<i64: 64, 128>}, {pipeline_mode = #tpu.pipeline_mode<synchronous>, transform_indices = @transform_2, window_bounds = array<i64: 1, 128>}, {pipeline_mode = #tpu.pipeline_mode<synchronous>, transform_indices = @transform_3, window_bounds = array<i64: 1, 128>}, {pipeline_mode = #tpu.pipeline_mode<synchronous>, transform_indices = @transform_4, window_bounds = array<i64: 128, 8>}, {pipeline_mode = #tpu.pipeline_mode<synchronous>, transform_indices = @transform_5, window_bounds = array<i64: 8, 128>}, {pipeline_mode = #tpu.pipeline_mode<synchronous>, transform_indices = @transform_6, window_bounds = array<i64: 32, 32>}, {pipeline_mode = #tpu.pipeline_mode<synchronous>, transform_indices = @transform_7, window_bounds = array<i64: 32, 32>}, {pipeline_mode = #tpu.pipeline_mode<synchronous>, transform_indices = @transform_8, window_bounds = array<i64: 32, 1>}, {pipeline_mode = #tpu.pipeline_mode<synchronous>, transform_indices = @transform_9, window_bounds = array<i64: 32, 1>}, {pipeline_mode = #tpu.pipeline_mode<synchronous>, transform_indices = @transform_10, window_bounds = array<i64: 64, 96>}, {pipeline_mode = #tpu.pipeline_mode<synchronous>, transform_indices = @transform_11, window_bounds = array<i64: 64, 1>}, {pipeline_mode = #tpu.pipeline_mode<synchronous>, transform_indices = @transform_12, window_bounds = array<i64: 32, 64>}, {pipeline_mode = #tpu.pipeline_mode<synchronous>, transform_indices = @transform_13, window_bounds = array<i64: 64, 32>}, {pipeline_mode = #tpu.pipeline_mode<synchronous>, transform_indices = @transform_14, window_bounds = array<i64: 64, 1>}, {pipeline_mode = #tpu.pipeline_mode<synchronous>, transform_indices = @transform_15, window_bounds = array<i64: 64, 1>}, {pipeline_mode = #tpu.pipeline_mode<synchronous>, transform_indices = @transform_16, window_bounds = array<i64: 64, 224>}, {pipeline_mode = #tpu.pipeline_mode<synchronous>, transform_indices = @transform_17, window_bounds = array<i64: 64, 1>}, {transform_indices = @transform_18, window_bounds = array<i64: 64, 128>}]} {
    %c0 = arith.constant 0 : index
    %c0_0 = arith.constant 0 : index
    %0 = vector.load %arg1[%c0, %c0_0] : memref<32x128xf32, #tpu.memory_space<vmem>>, vector<32x128xf32>
    %c0_1 = arith.constant 0 : index
    %c0_2 = arith.constant 0 : index
    %1 = vector.load %arg3[%c0_1, %c0_2] : memref<1x128xf32, #tpu.memory_space<vmem>>, vector<1x128xf32>
    %c0_3 = arith.constant 0 : index
    %c0_4 = arith.constant 0 : index
    %2 = vector.load %arg4[%c0_3, %c0_4] : memref<1x128xf32, #tpu.memory_space<vmem>>, vector<1x128xf32>
    %c0_5 = arith.constant 0 : index
    %c0_6 = arith.constant 0 : index
    %3 = vector.load %arg5[%c0_5, %c0_6] : memref<128x8xf32, #tpu.memory_space<vmem>>, vector<128x8xf32>
    %c0_7 = arith.constant 0 : index
    %c0_8 = arith.constant 0 : index
    %4 = vector.load %arg6[%c0_7, %c0_8] : memref<8x128xf32, #tpu.memory_space<vmem>>, vector<8x128xf32>
    %c0_9 = arith.constant 0 : index
    %c0_10 = arith.constant 0 : index
    %5 = vector.load %arg7[%c0_9, %c0_10] : memref<32x32xf32, #tpu.memory_space<vmem>>, vector<32x32xf32>
    %c0_11 = arith.constant 0 : index
    %c0_12 = arith.constant 0 : index
    %6 = vector.load %arg8[%c0_11, %c0_12] : memref<32x32xf32, #tpu.memory_space<vmem>>, vector<32x32xf32>
    %cst = arith.constant dense<0.000000e+00> : vector<32x128xf32>
    %7 = tpu.matmul %5, %0, %cst {dimension_numbers = #tpu.dot_dimension_numbers<[1], [0], [0], [1], [0, 0, 1, 1], [], []>} : vector<32x32xf32>, vector<32x128xf32>, vector<32x128xf32> -> vector<32x128xf32>
    %cst_13 = arith.constant dense<0.000000e+00> : vector<32x8xf32>
    %8 = tpu.matmul %7, %3, %cst_13 {dimension_numbers = #tpu.dot_dimension_numbers<[1], [0], [0], [1], [0, 0, 1, 1], [], []>} : vector<32x128xf32>, vector<128x8xf32>, vector<32x8xf32> -> vector<32x8xf32>
    %cst_14 = arith.constant dense<0.000000e+00> : vector<32x8xf32>
    %9 = tpu.matmul %6, %8, %cst_14 {dimension_numbers = #tpu.dot_dimension_numbers<[1], [0], [0], [1], [0, 0, 1, 1], [], []>} : vector<32x32xf32>, vector<32x8xf32>, vector<32x8xf32> -> vector<32x8xf32>
    %cst_15 = arith.constant dense<0.000000e+00> : vector<32x128xf32>
    %10 = tpu.matmul %9, %4, %cst_15 {dimension_numbers = #tpu.dot_dimension_numbers<[1], [0], [0], [1], [0, 0, 1, 1], [], []>} : vector<32x8xf32>, vector<8x128xf32>, vector<32x128xf32> -> vector<32x128xf32>
    %11 = arith.subf %0, %10 : vector<32x128xf32>
    %12 = arith.mulf %11, %11 : vector<32x128xf32>
    %cst_16 = arith.constant dense<0.000000e+00> : vector<32x128xf32>
    %13 = tpu.matmul %5, %12, %cst_16 {dimension_numbers = #tpu.dot_dimension_numbers<[1], [0], [0], [1], [0, 0, 1, 1], [], []>} : vector<32x32xf32>, vector<32x128xf32>, vector<32x128xf32> -> vector<32x128xf32>
    %cst_17 = arith.constant dense<0.000000e+00> : vector<32x8xf32>
    %14 = tpu.matmul %13, %3, %cst_17 {dimension_numbers = #tpu.dot_dimension_numbers<[1], [0], [0], [1], [0, 0, 1, 1], [], []>} : vector<32x128xf32>, vector<128x8xf32>, vector<32x8xf32> -> vector<32x8xf32>
    %cst_18 = arith.constant dense<0.000000e+00> : vector<32x8xf32>
    %15 = tpu.matmul %6, %14, %cst_18 {dimension_numbers = #tpu.dot_dimension_numbers<[1], [0], [0], [1], [0, 0, 1, 1], [], []>} : vector<32x32xf32>, vector<32x8xf32>, vector<32x8xf32> -> vector<32x8xf32>
    %cst_19 = arith.constant dense<0.000000e+00> : vector<32x128xf32>
    %16 = tpu.matmul %15, %4, %cst_19 {dimension_numbers = #tpu.dot_dimension_numbers<[1], [0], [0], [1], [0, 0, 1, 1], [], []>} : vector<32x8xf32>, vector<8x128xf32>, vector<32x128xf32> -> vector<32x128xf32>
    %cst_20 = arith.constant 9.99999974E-6 : f32
    %17 = vector.broadcast %cst_20 : f32 to vector<32x128xf32>
    %18 = arith.addf %16, %17 : vector<32x128xf32>
    %19 = math.rsqrt %18 : vector<32x128xf32>
    %20 = arith.mulf %11, %19 : vector<32x128xf32>
    %c0_21 = arith.constant 0 : index
    %c0_22 = arith.constant 0 : index
    %21 = vector.load %arg9[%c0_21, %c0_22] : memref<32x1xf32, #tpu.memory_space<vmem>>, vector<32x1xf32>
    %22 = vector.broadcast %21 : vector<32x1xf32> to vector<32x128xf32>
    %23 = arith.mulf %20, %22 : vector<32x128xf32>
    %c0_23 = arith.constant 0 : index
    %c0_24 = arith.constant 0 : index
    %24 = vector.load %arg10[%c0_23, %c0_24] : memref<32x1xf32, #tpu.memory_space<vmem>>, vector<32x1xf32>
    %25 = vector.broadcast %24 : vector<32x1xf32> to vector<32x128xf32>
    %26 = arith.addf %23, %25 : vector<32x128xf32>
    %27 = arith.negf %26 : vector<32x128xf32>
    %28 = math.exp %27 : vector<32x128xf32>
    %cst_25 = arith.constant 1.000000e+00 : f32
    %29 = vector.broadcast %cst_25 : f32 to vector<32x128xf32>
    %30 = arith.addf %29, %28 : vector<32x128xf32>
    %31 = arith.divf %29, %30 : vector<32x128xf32>
    %32 = arith.mulf %26, %31 : vector<32x128xf32>
    %c0_26 = arith.constant 0 : index
    %c0_27 = arith.constant 0 : index
    %33 = vector.load %arg11[%c0_26, %c0_27] : memref<64x96xbf16, #tpu.memory_space<vmem>>, vector<64x96xbf16>
    %c1_i32 = arith.constant 1 : i32
    %34 = tpu.dynamic_rotate %32 by %c1_i32 dim 1 : vector<32x128xf32>, i32 -> vector<32x128xf32>
    %35 = vector.broadcast %1 : vector<1x128xf32> to vector<32x128xf32>
    %36 = arith.mulf %34, %35 : vector<32x128xf32>
    %37 = arith.truncf %36 : vector<32x128xf32> to vector<32x128xbf16>
    %c127_i32 = arith.constant 127 : i32
    %38 = tpu.dynamic_rotate %32 by %c127_i32 dim 1 : vector<32x128xf32>, i32 -> vector<32x128xf32>
    %39 = vector.broadcast %2 : vector<1x128xf32> to vector<32x128xf32>
    %40 = arith.mulf %38, %39 : vector<32x128xf32>
    %41 = arith.truncf %40 : vector<32x128xf32> to vector<32x128xbf16>
    %42 = arith.truncf %32 : vector<32x128xf32> to vector<32x128xbf16>
    %43 = tpu.concatenate %37, %42, %41 in 0 : vector<32x128xbf16>, vector<32x128xbf16>, vector<32x128xbf16> -> vector<96x128xbf16>
    %cst_28 = arith.constant dense<0.000000e+00> : vector<64x128xf32>
    %44 = tpu.matmul %33, %43, %cst_28 {dimension_numbers = #tpu.dot_dimension_numbers<[1], [0], [0], [1], [0, 0, 1, 1], [], []>} : vector<64x96xbf16>, vector<96x128xbf16>, vector<64x128xf32> -> vector<64x128xf32>
    %c0_29 = arith.constant 0 : index
    %c0_30 = arith.constant 0 : index
    %45 = vector.load %arg12[%c0_29, %c0_30] : memref<64x1xf32, #tpu.memory_space<vmem>>, vector<64x1xf32>
    %46 = vector.broadcast %45 : vector<64x1xf32> to vector<64x128xf32>
    %47 = arith.addf %44, %46 : vector<64x128xf32>
    %c0_31 = arith.constant 0 : index
    %c0_32 = arith.constant 0 : index
    %48 = vector.load %arg2[%c0_31, %c0_32] : memref<64x128xf32, #tpu.memory_space<vmem>>, vector<64x128xf32>
    %49 = arith.addf %47, %48 : vector<64x128xf32>
    %c0_33 = arith.constant 0 : index
    %c0_34 = arith.constant 0 : index
    %50 = vector.load %arg13[%c0_33, %c0_34] : memref<32x64xf32, #tpu.memory_space<vmem>>, vector<32x64xf32>
    %c0_35 = arith.constant 0 : index
    %c0_36 = arith.constant 0 : index
    %51 = vector.load %arg14[%c0_35, %c0_36] : memref<64x32xf32, #tpu.memory_space<vmem>>, vector<64x32xf32>
    %cst_37 = arith.constant dense<0.000000e+00> : vector<32x128xf32>
    %52 = tpu.matmul %50, %49, %cst_37 {dimension_numbers = #tpu.dot_dimension_numbers<[1], [0], [0], [1], [0, 0, 1, 1], [], []>} : vector<32x64xf32>, vector<64x128xf32>, vector<32x128xf32> -> vector<32x128xf32>
    %cst_38 = arith.constant dense<0.000000e+00> : vector<32x8xf32>
    %53 = tpu.matmul %52, %3, %cst_38 {dimension_numbers = #tpu.dot_dimension_numbers<[1], [0], [0], [1], [0, 0, 1, 1], [], []>} : vector<32x128xf32>, vector<128x8xf32>, vector<32x8xf32> -> vector<32x8xf32>
    %cst_39 = arith.constant dense<0.000000e+00> : vector<64x8xf32>
    %54 = tpu.matmul %51, %53, %cst_39 {dimension_numbers = #tpu.dot_dimension_numbers<[1], [0], [0], [1], [0, 0, 1, 1], [], []>} : vector<64x32xf32>, vector<32x8xf32>, vector<64x8xf32> -> vector<64x8xf32>
    %cst_40 = arith.constant dense<0.000000e+00> : vector<64x128xf32>
    %55 = tpu.matmul %54, %4, %cst_40 {dimension_numbers = #tpu.dot_dimension_numbers<[1], [0], [0], [1], [0, 0, 1, 1], [], []>} : vector<64x8xf32>, vector<8x128xf32>, vector<64x128xf32> -> vector<64x128xf32>
    %56 = arith.subf %49, %55 : vector<64x128xf32>
    %57 = arith.mulf %56, %56 : vector<64x128xf32>
    %cst_41 = arith.constant dense<0.000000e+00> : vector<32x128xf32>
    %58 = tpu.matmul %50, %57, %cst_41 {dimension_numbers = #tpu.dot_dimension_numbers<[1], [0], [0], [1], [0, 0, 1, 1], [], []>} : vector<32x64xf32>, vector<64x128xf32>, vector<32x128xf32> -> vector<32x128xf32>
    %cst_42 = arith.constant dense<0.000000e+00> : vector<32x8xf32>
    %59 = tpu.matmul %58, %3, %cst_42 {dimension_numbers = #tpu.dot_dimension_numbers<[1], [0], [0], [1], [0, 0, 1, 1], [], []>} : vector<32x128xf32>, vector<128x8xf32>, vector<32x8xf32> -> vector<32x8xf32>
    %cst_43 = arith.constant dense<0.000000e+00> : vector<64x8xf32>
    %60 = tpu.matmul %51, %59, %cst_43 {dimension_numbers = #tpu.dot_dimension_numbers<[1], [0], [0], [1], [0, 0, 1, 1], [], []>} : vector<64x32xf32>, vector<32x8xf32>, vector<64x8xf32> -> vector<64x8xf32>
    %cst_44 = arith.constant dense<0.000000e+00> : vector<64x128xf32>
    %61 = tpu.matmul %60, %4, %cst_44 {dimension_numbers = #tpu.dot_dimension_numbers<[1], [0], [0], [1], [0, 0, 1, 1], [], []>} : vector<64x8xf32>, vector<8x128xf32>, vector<64x128xf32> -> vector<64x128xf32>
    %cst_45 = arith.constant 9.99999974E-6 : f32
    %62 = vector.broadcast %cst_45 : f32 to vector<64x128xf32>
    %63 = arith.addf %61, %62 : vector<64x128xf32>
    %64 = math.rsqrt %63 : vector<64x128xf32>
    %65 = arith.mulf %56, %64 : vector<64x128xf32>
    %c0_46 = arith.constant 0 : index
    %c0_47 = arith.constant 0 : index
    %66 = vector.load %arg15[%c0_46, %c0_47] : memref<64x1xf32, #tpu.memory_space<vmem>>, vector<64x1xf32>
    %67 = vector.broadcast %66 : vector<64x1xf32> to vector<64x128xf32>
    %68 = arith.mulf %65, %67 : vector<64x128xf32>
    %c0_48 = arith.constant 0 : index
    %c0_49 = arith.constant 0 : index
    %69 = vector.load %arg16[%c0_48, %c0_49] : memref<64x1xf32, #tpu.memory_space<vmem>>, vector<64x1xf32>
    %70 = vector.broadcast %69 : vector<64x1xf32> to vector<64x128xf32>
    %71 = arith.addf %68, %70 : vector<64x128xf32>
    %72 = arith.negf %71 : vector<64x128xf32>
    %73 = math.exp %72 : vector<64x128xf32>
    %cst_50 = arith.constant 1.000000e+00 : f32
    %74 = vector.broadcast %cst_50 : f32 to vector<64x128xf32>
    %75 = arith.addf %74, %73 : vector<64x128xf32>
    %76 = arith.divf %74, %75 : vector<64x128xf32>
    %77 = arith.mulf %71, %76 : vector<64x128xf32>
    %c0_51 = arith.constant 0 : index
    %c0_52 = arith.constant 0 : index
    %78 = vector.load %arg17[%c0_51, %c0_52] : memref<64x224xbf16, #tpu.memory_space<vmem>>, vector<64x224xbf16>
    %c1_i32_53 = arith.constant 1 : i32
    %79 = tpu.dynamic_rotate %77 by %c1_i32_53 dim 1 : vector<64x128xf32>, i32 -> vector<64x128xf32>
    %80 = vector.broadcast %1 : vector<1x128xf32> to vector<64x128xf32>
    %81 = arith.mulf %79, %80 : vector<64x128xf32>
    %82 = arith.truncf %81 : vector<64x128xf32> to vector<64x128xbf16>
    %c127_i32_54 = arith.constant 127 : i32
    %83 = tpu.dynamic_rotate %77 by %c127_i32_54 dim 1 : vector<64x128xf32>, i32 -> vector<64x128xf32>
    %84 = vector.broadcast %2 : vector<1x128xf32> to vector<64x128xf32>
    %85 = arith.mulf %83, %84 : vector<64x128xf32>
    %86 = arith.truncf %85 : vector<64x128xf32> to vector<64x128xbf16>
    %87 = arith.truncf %77 : vector<64x128xf32> to vector<64x128xbf16>
    %88 = arith.truncf %0 : vector<32x128xf32> to vector<32x128xbf16>
    %89 = tpu.concatenate %82, %87, %86, %88 in 0 : vector<64x128xbf16>, vector<64x128xbf16>, vector<64x128xbf16>, vector<32x128xbf16> -> vector<224x128xbf16>
    %cst_55 = arith.constant dense<0.000000e+00> : vector<64x128xf32>
    %90 = tpu.matmul %78, %89, %cst_55 {dimension_numbers = #tpu.dot_dimension_numbers<[1], [0], [0], [1], [0, 0, 1, 1], [], []>} : vector<64x224xbf16>, vector<224x128xbf16>, vector<64x128xf32> -> vector<64x128xf32>
    %c0_56 = arith.constant 0 : index
    %c0_57 = arith.constant 0 : index
    %91 = vector.load %arg18[%c0_56, %c0_57] : memref<64x1xf32, #tpu.memory_space<vmem>>, vector<64x1xf32>
    %92 = vector.broadcast %91 : vector<64x1xf32> to vector<64x128xf32>
    %93 = arith.addf %90, %92 : vector<64x128xf32>
    %c0_58 = arith.constant 0 : index
    %c0_59 = arith.constant 0 : index
    %94 = vector.load %arg19[%c0_58, %c0_59] : memref<64x128xf32, #tpu.memory_space<vmem>>, vector<64x128xf32>
    tpu.vector_store %arg19[%c0_58, %c0_59], %93 {strides = array<i32>} : memref<64x128xf32, #tpu.memory_space<vmem>>, vector<64x128xf32>,
    return
  }
  func.func @transform_0(%arg0: i32) -> (i32, i32) {
    %c0_i32 = arith.constant 0 : i32
    %c0_i32_0 = arith.constant 0 : i32
    return %c0_i32, %arg0 : i32, i32
  }
  func.func @transform_1(%arg0: i32) -> (i32, i32) {
    %c0_i32 = arith.constant 0 : i32
    %c0_i32_0 = arith.constant 0 : i32
    return %c0_i32, %arg0 : i32, i32
  }
  func.func @transform_2(%arg0: i32) -> (i32, i32) {
    %c0_i32 = arith.constant 0 : i32
    %c0_i32_0 = arith.constant 0 : i32
    %c0_i32_1 = arith.constant 0 : i32
    return %c0_i32, %c0_i32_0 : i32, i32
  }
  func.func @transform_3(%arg0: i32) -> (i32, i32) {
    %c0_i32 = arith.constant 0 : i32
    %c0_i32_0 = arith.constant 0 : i32
    %c0_i32_1 = arith.constant 0 : i32
    return %c0_i32, %c0_i32_0 : i32, i32
  }
  func.func @transform_4(%arg0: i32) -> (i32, i32) {
    %c0_i32 = arith.constant 0 : i32
    %c0_i32_0 = arith.constant 0 : i32
    %c0_i32_1 = arith.constant 0 : i32
    return %c0_i32, %c0_i32_0 : i32, i32
  }
  func.func @transform_5(%arg0: i32) -> (i32, i32) {
    %c0_i32 = arith.constant 0 : i32
    %c0_i32_0 = arith.constant 0 : i32
    %c0_i32_1 = arith.constant 0 : i32
    return %c0_i32, %c0_i32_0 : i32, i32
  }
  func.func @transform_6(%arg0: i32) -> (i32, i32) {
    %c0_i32 = arith.constant 0 : i32
    %c0_i32_0 = arith.constant 0 : i32
    %c0_i32_1 = arith.constant 0 : i32
    return %c0_i32, %c0_i32_0 : i32, i32
  }
  func.func @transform_7(%arg0: i32) -> (i32, i32) {
    %c0_i32 = arith.constant 0 : i32
    %c0_i32_0 = arith.constant 0 : i32
    %c0_i32_1 = arith.constant 0 : i32
    return %c0_i32, %c0_i32_0 : i32, i32
  }
  func.func @transform_8(%arg0: i32) -> (i32, i32) {
    %c0_i32 = arith.constant 0 : i32
    %c0_i32_0 = arith.constant 0 : i32
    %c0_i32_1 = arith.constant 0 : i32
    return %c0_i32, %c0_i32_0 : i32, i32
  }
  func.func @transform_9(%arg0: i32) -> (i32, i32) {
    %c0_i32 = arith.constant 0 : i32
    %c0_i32_0 = arith.constant 0 : i32
    %c0_i32_1 = arith.constant 0 : i32
    return %c0_i32, %c0_i32_0 : i32, i32
  }
  func.func @transform_10(%arg0: i32) -> (i32, i32) {
    %c0_i32 = arith.constant 0 : i32
    %c0_i32_0 = arith.constant 0 : i32
    %c0_i32_1 = arith.constant 0 : i32
    return %c0_i32, %c0_i32_0 : i32, i32
  }
  func.func @transform_11(%arg0: i32) -> (i32, i32) {
    %c0_i32 = arith.constant 0 : i32
    %c0_i32_0 = arith.constant 0 : i32
    %c0_i32_1 = arith.constant 0 : i32
    return %c0_i32, %c0_i32_0 : i32, i32
  }
  func.func @transform_12(%arg0: i32) -> (i32, i32) {
    %c0_i32 = arith.constant 0 : i32
    %c0_i32_0 = arith.constant 0 : i32
    %c0_i32_1 = arith.constant 0 : i32
    return %c0_i32, %c0_i32_0 : i32, i32
  }
  func.func @transform_13(%arg0: i32) -> (i32, i32) {
    %c0_i32 = arith.constant 0 : i32
    %c0_i32_0 = arith.constant 0 : i32
    %c0_i32_1 = arith.constant 0 : i32
    return %c0_i32, %c0_i32_0 : i32, i32
  }
  func.func @transform_14(%arg0: i32) -> (i32, i32) {
    %c0_i32 = arith.constant 0 : i32
    %c0_i32_0 = arith.constant 0 : i32
    %c0_i32_1 = arith.constant 0 : i32
    return %c0_i32, %c0_i32_0 : i32, i32
  }
  func.func @transform_15(%arg0: i32) -> (i32, i32) {
    %c0_i32 = arith.constant 0 : i32
    %c0_i32_0 = arith.constant 0 : i32
    %c0_i32_1 = arith.constant 0 : i32
    return %c0_i32, %c0_i32_0 : i32, i32
  }
  func.func @transform_16(%arg0: i32) -> (i32, i32) {
    %c0_i32 = arith.constant 0 : i32
    %c0_i32_0 = arith.constant 0 : i32
    %c0_i32_1 = arith.constant 0 : i32
    return %c0_i32, %c0_i32_0 : i32, i32
  }
  func.func @transform_17(%arg0: i32) -> (i32, i32) {
    %c0_i32 = arith.constant 0 : i32
    %c0_i32_0 = arith.constant 0 : i32
    %c0_i32_1 = arith.constant 0 : i32
    return %c0_i32, %c0_i32_0 : i32, i32
  }
  func.func @transform_18(%arg0: i32) -> (i32, i32) {
    %c0_i32 = arith.constant 0 : i32
    %c0_i32_0 = arith.constant 0 : i32
    return %c0_i32, %arg0 : i32, i32
  }
}

</mosaic_0001>

<llo_original>
// kernel: tpu_custom_call.1
$region0: #{tpu_custom_call.1}
  #allocation0 [shape = 'u32[]', space=smem, size = 0x4, offset = 0x4, fixed_abs, tag = 'smem constant byte address 0x4 - core index']
  #allocation1 [shape = 'u32[72,128]{1,0:T(1,128)}', space=vmem, size = 0x9000, scoped, tag = 'internal scratch']
  %s0 = inlined_call_operand.vmem [shape: f32[32,128], index: 0, kind: input, shape index: {}]
  %s1 = inlined_call_operand.vmem [shape: f32[64,128], index: 1, kind: input, shape index: {}]
  %s2 = inlined_call_operand.vmem [shape: f32[1,128], index: 2, kind: input, shape index: {}]
  %s3 = inlined_call_operand.vmem [shape: f32[1,128], index: 3, kind: input, shape index: {}]
  %s4 = inlined_call_operand.vmem [shape: f32[128,8], index: 4, kind: input, shape index: {}]
  %s5 = inlined_call_operand.vmem [shape: f32[8,128], index: 5, kind: input, shape index: {}]
  %s6 = inlined_call_operand.vmem [shape: f32[32,32], index: 6, kind: input, shape index: {}]
  %s7 = inlined_call_operand.vmem [shape: f32[32,32], index: 7, kind: input, shape index: {}]
  %s8 = inlined_call_operand.vmem [shape: f32[32,1], index: 8, kind: input, shape index: {}]
  %s9 = inlined_call_operand.vmem [shape: f32[32,1], index: 9, kind: input, shape index: {}]
  %s10 = inlined_call_operand.vmem [shape: bf16[64,96], index: 10, kind: input, shape index: {}]
  %s11 = inlined_call_operand.vmem [shape: f32[64,1], index: 11, kind: input, shape index: {}]
  %s12 = inlined_call_operand.vmem [shape: f32[32,64], index: 12, kind: input, shape index: {}]
  %s13 = inlined_call_operand.vmem [shape: f32[64,32], index: 13, kind: input, shape index: {}]
  %s14 = inlined_call_operand.vmem [shape: f32[64,1], index: 14, kind: input, shape index: {}]
  %s15 = inlined_call_operand.vmem [shape: f32[64,1], index: 15, kind: input, shape index: {}]
  %s16 = inlined_call_operand.vmem [shape: bf16[64,224], index: 16, kind: input, shape index: {}]
  %s17 = inlined_call_operand.vmem [shape: f32[64,1], index: 17, kind: input, shape index: {}]
  %s18 = inlined_call_operand.hbm [shape: f32[64,128], index: 18, kind: output, shape index: {}]
  %s19 = sld [smem:[#allocation0]]
  $region82: #{tpu_custom_call.1} parent=0
    _
  %s21 = ssub.s32 1, %s19
  %s22 = scalar_select 0, %s21, %s19
  $region1: #{tpu_custom_call.1} parent=0
    #allocation2 [shape = 'u8[32768]{0}', space=vmem, size = 0x8000, scoped, tag = 'output window, operand 0, single buffered']
    #allocation3 [shape = 's32[1]{0}', space=sflag, size = 0x4, scoped, tag = 'scoped memory for tpu_custom_call.1']
    %23 = vsyncpa [#allocation3], 0
    // Predicated region
    $region2: #{tpu_custom_call.1} parent=1 // pred_check
      _
    $region3: #{tpu_custom_call.1} parent=1 // pred_check_branch
      %25 = sbr.rel (0) target = $region5
    $region4: #{tpu_custom_call.1} parent=1 // pred_region
      _
    $region5: #{tpu_custom_call.1} parent=1 // pred_fallthru
      _
    // Predicated region
    $region6: #{tpu_custom_call.1} parent=1 // pred_check
      _
    $region7: #{tpu_custom_call.1} parent=1 // pred_check_branch
      %27 = sbr.rel (0) target = $region9
    $region8: #{tpu_custom_call.1} parent=1 // pred_region
      _
    $region9: #{tpu_custom_call.1} parent=1 // pred_fallthru
      _
    // Predicated region
    $region10: #{tpu_custom_call.1} parent=1 // pred_check
      _
    $region11: #{tpu_custom_call.1} parent=1 // pred_check_branch
      %29 = sbr.rel (0) target = $region13
    $region12: #{tpu_custom_call.1} parent=1 // pred_region
      _
    $region13: #{tpu_custom_call.1} parent=1 // pred_fallthru
      _
    // Predicated region
    $region14: #{tpu_custom_call.1} parent=1 // pred_check
      _
    $region15: #{tpu_custom_call.1} parent=1 // pred_check_branch
      %31 = sbr.rel (0) target = $region17
    $region16: #{tpu_custom_call.1} parent=1 // pred_region
      _
    $region17: #{tpu_custom_call.1} parent=1 // pred_fallthru
      _
    // Predicated region
    $region18: #{tpu_custom_call.1} parent=1 // pred_check
      _
    $region19: #{tpu_custom_call.1} parent=1 // pred_check_branch
      %33 = sbr.rel (0) target = $region21
    $region20: #{tpu_custom_call.1} parent=1 // pred_region
      _
    $region21: #{tpu_custom_call.1} parent=1 // pred_fallthru
      _
    // Predicated region
    $region22: #{tpu_custom_call.1} parent=1 // pred_check
      _
    $region23: #{tpu_custom_call.1} parent=1 // pred_check_branch
      %35 = sbr.rel (0) target = $region25
    $region24: #{tpu_custom_call.1} parent=1 // pred_region
      _
    $region25: #{tpu_custom_call.1} parent=1 // pred_fallthru
      _
    // Predicated region
    $region26: #{tpu_custom_call.1} parent=1 // pred_check
      _
    $region27: #{tpu_custom_call.1} parent=1 // pred_check_branch
      %37 = sbr.rel (0) target = $region29
    $region28: #{tpu_custom_call.1} parent=1 // pred_region
      _
    $region29: #{tpu_custom_call.1} parent=1 // pred_fallthru
      _
    // Predicated region
    $region30: #{tpu_custom_call.1} parent=1 // pred_check
      _
    $region31: #{tpu_custom_call.1} parent=1 // pred_check_branch
      %39 = sbr.rel (0) target = $region33
    $region32: #{tpu_custom_call.1} parent=1 // pred_region
      _
    $region33: #{tpu_custom_call.1} parent=1 // pred_fallthru
      _
    // Predicated region
    $region34: #{tpu_custom_call.1} parent=1 // pred_check
      _
    $region35: #{tpu_custom_call.1} parent=1 // pred_check_branch
      %41 = sbr.rel (0) target = $region37
    $region36: #{tpu_custom_call.1} parent=1 // pred_region
      _
    $region37: #{tpu_custom_call.1} parent=1 // pred_fallthru
      _
    // Predicated region
    $region38: #{tpu_custom_call.1} parent=1 // pred_check
      _
    $region39: #{tpu_custom_call.1} parent=1 // pred_check_branch
      %43 = sbr.rel (0) target = $region41
    $region40: #{tpu_custom_call.1} parent=1 // pred_region
      _
    $region41: #{tpu_custom_call.1} parent=1 // pred_fallthru
      _
    // Predicated region
    $region42: #{tpu_custom_call.1} parent=1 // pred_check
      _
    $region43: #{tpu_custom_call.1} parent=1 // pred_check_branch
      %45 = sbr.rel (0) target = $region45
    $region44: #{tpu_custom_call.1} parent=1 // pred_region
      _
    $region45: #{tpu_custom_call.1} parent=1 // pred_fallthru
      _
    // Predicated region
    $region46: #{tpu_custom_call.1} parent=1 // pred_check
      _
    $region47: #{tpu_custom_call.1} parent=1 // pred_check_branch
      %47 = sbr.rel (0) target = $region49
    $region48: #{tpu_custom_call.1} parent=1 // pred_region
      _
    $region49: #{tpu_custom_call.1} parent=1 // pred_fallthru
      _
    // Predicated region
    $region50: #{tpu_custom_call.1} parent=1 // pred_check
      _
    $region51: #{tpu_custom_call.1} parent=1 // pred_check_branch
      %49 = sbr.rel (0) target = $region53
    $region52: #{tpu_custom_call.1} parent=1 // pred_region
      _
    $region53: #{tpu_custom_call.1} parent=1 // pred_fallthru
      _
    // Predicated region
    $region54: #{tpu_custom_call.1} parent=1 // pred_check
      _
    $region55: #{tpu_custom_call.1} parent=1 // pred_check_branch
      %51 = sbr.rel (0) target = $region57
    $region56: #{tpu_custom_call.1} parent=1 // pred_region
      _
    $region57: #{tpu_custom_call.1} parent=1 // pred_fallthru
      _
    // Predicated region
    $region58: #{tpu_custom_call.1} parent=1 // pred_check
      _
    $region59: #{tpu_custom_call.1} parent=1 // pred_check_branch
      %53 = sbr.rel (0) target = $region61
    $region60: #{tpu_custom_call.1} parent=1 // pred_region
      _
    $region61: #{tpu_custom_call.1} parent=1 // pred_fallthru
      _
    // Predicated region
    $region62: #{tpu_custom_call.1} parent=1 // pred_check
      _
    $region63: #{tpu_custom_call.1} parent=1 // pred_check_branch
      %55 = sbr.rel (0) target = $region65
    $region64: #{tpu_custom_call.1} parent=1 // pred_region
      _
    $region65: #{tpu_custom_call.1} parent=1 // pred_fallthru
      _
    // Predicated region
    $region66: #{tpu_custom_call.1} parent=1 // pred_check
      _
    $region67: #{tpu_custom_call.1} parent=1 // pred_check_branch
      %57 = sbr.rel (0) target = $region69
    $region68: #{tpu_custom_call.1} parent=1 // pred_region
      _
    $region69: #{tpu_custom_call.1} parent=1 // pred_fallthru
      _
    // Predicated region
    $region70: #{tpu_custom_call.1} parent=1 // pred_check
      _
    $region71: #{tpu_custom_call.1} parent=1 // pred_check_branch
      %59 = sbr.rel (0) target = $region73
    $region72: #{tpu_custom_call.1} parent=1 // pred_region
      _
    $region73: #{tpu_custom_call.1} parent=1 // pred_fallthru
      _
    %v61 = vld [vmem:[%s0] sm:$0xff]
    %v62 = vld [vmem:[%s0 + $0x8] sm:$0xff]
    %v63 = vld [vmem:[%s0 + $0x10] sm:$0xff]
    %v64 = vld [vmem:[%s0 + $0x18] sm:$0xff]
    %v65 = vld [vmem:[%s2] sm:$0x1]
    %v66 = vld [vmem:[%s3] sm:$0x1]
    %v67 = vld [vmem:[%s4] sm:$0xff]
    %v68 = vld [vmem:[%s4 + $0x8] sm:$0xff]
    %v69 = vld [vmem:[%s4 + $0x10] sm:$0xff]
    %v70 = vld [vmem:[%s4 + $0x18] sm:$0xff]
    %v71 = vld [vmem:[%s4 + $0x20] sm:$0xff]
    %v72 = vld [vmem:[%s4 + $0x28] sm:$0xff]
    %v73 = vld [vmem:[%s4 + $0x30] sm:$0xff]
    %v74 = vld [vmem:[%s4 + $0x38] sm:$0xff]
    %v75 = vld [vmem:[%s4 + $0x40] sm:$0xff]
    %v76 = vld [vmem:[%s4 + $0x48] sm:$0xff]
    %v77 = vld [vmem:[%s4 + $0x50] sm:$0xff]
    %v78 = vld [vmem:[%s4 + $0x58] sm:$0xff]
    %v79 = vld [vmem:[%s4 + $0x60] sm:$0xff]
    %v80 = vld [vmem:[%s4 + $0x68] sm:$0xff]
    %v81 = vld [vmem:[%s4 + $0x70] sm:$0xff]
    %v82 = vld [vmem:[%s4 + $0x78] sm:$0xff]
    %v83 = vld [vmem:[%s5] sm:$0xff]
    %v84 = vld [vmem:[%s6] sm:$0xff]
    %v85 = vld [vmem:[%s6 + $0x8] sm:$0xff]
    %v86 = vld [vmem:[%s6 + $0x10] sm:$0xff]
    %v87 = vld [vmem:[%s6 + $0x18] sm:$0xff]
    %v88 = vld [vmem:[%s7] sm:$0xff]
    %v89 = vld [vmem:[%s7 + $0x8] sm:$0xff]
    %v90 = vld [vmem:[%s7 + $0x10] sm:$0xff]
    %v91 = vld [vmem:[%s7 + $0x18] sm:$0xff]
    %vm92 = vcmask 261120
    %v94 = vsel %vm92, %v84, 0
    %v97 = vsel %vm92, %v85, 0
    %v100 = vsel %vm92, %v86, 0
    %v103 = vsel %vm92, %v87, 0
    %105 = vmatpush.msra.mxu0 0.0
    %106 = vmatpush.msra.mxu0 0.0
    %107 = vmatpush.msra.mxu0 0.0
    %108 = vmatpush.msra.mxu0 0.0
    %109 = vmatpush.msra.mxu0 0.0
    %110 = vmatpush.msra.mxu0 0.0
    %111 = vmatpush.msra.mxu0 0.0
    %112 = vmatpush.msra.mxu0 0.0
    %113 = vmatpush.msra.mxu0 0.0
    %114 = vmatpush.msra.mxu0 0.0
    %115 = vmatpush.msra.mxu0 0.0
    %116 = vmatpush.msra.mxu0 0.0
    %117 = vmatpush.msra.mxu0 %v64
    %118 = vmatpush.msra.mxu0 %v63
    %119 = vmatpush.msra.mxu0 %v62
    %120 = vmatpush.msra.mxu0 %v61
    %121 = vmatmul.f32.gmra.mxu0 %v94
    %v122 = vpop.f32.mrf.mxu0
    %v123 = vadd.f32 0.0, %v122
    %124 = vmatmul.f32.gmra.mxu0 %v97
    %v125 = vpop.f32.mrf.mxu0
    %v126 = vadd.f32 0.0, %v125
    %127 = vmatmul.f32.gmra.mxu0 %v100
    %v128 = vpop.f32.mrf.mxu0
    %v129 = vadd.f32 0.0, %v128
    %130 = vmatmul.f32.gmra.mxu0 %v103
    %v131 = vpop.f32.mrf.mxu0
    %v132 = vadd.f32 0.0, %v131
    %133 = vdwg.mxu0
    %134 = vmatpush.msra.mxu0 %v82
    %135 = vmatpush.msra.mxu0 %v81
    %136 = vmatpush.msra.mxu0 %v80
    %137 = vmatpush.msra.mxu0 %v79
    %138 = vmatpush.msra.mxu0 %v78
    %139 = vmatpush.msra.mxu0 %v77
    %140 = vmatpush.msra.mxu0 %v76
    %141 = vmatpush.msra.mxu0 %v75
    %142 = vmatpush.msra.mxu0 %v74
    %143 = vmatpush.msra.mxu0 %v73
    %144 = vmatpush.msra.mxu0 %v72
    %145 = vmatpush.msra.mxu0 %v71
    %146 = vmatpush.msra.mxu0 %v70
    %147 = vmatpush.msra.mxu0 %v69
    %148 = vmatpush.msra.mxu0 %v68
    %149 = vmatpush.msra.mxu0 %v67
    %150 = vmatmul.f32.gmra.mxu0 %v123
    %v151 = vpop.f32.mrf.mxu0
    %v152 = vadd.f32 0.0, %v151
    %153 = vmatmul.f32.gmra.mxu0 %v126
    %v154 = vpop.f32.mrf.mxu0
    %v155 = vadd.f32 0.0, %v154
    %156 = vmatmul.f32.gmra.mxu0 %v129
    %v157 = vpop.f32.mrf.mxu0
    %v158 = vadd.f32 0.0, %v157
    %159 = vmatmul.f32.gmra.mxu0 %v132
    %v160 = vpop.f32.mrf.mxu0
    %v161 = vadd.f32 0.0, %v160
    %162 = vdwg.mxu0
    %v164 = vsel %vm92, %v88, 0
    %v167 = vsel %vm92, %v89, 0
    %v170 = vsel %vm92, %v90, 0
    %v173 = vsel %vm92, %v91, 0
    %175 = vmatpush.msra.mxu0 0.0
    %176 = vmatpush.msra.mxu0 0.0
    %177 = vmatpush.msra.mxu0 0.0
    %178 = vmatpush.msra.mxu0 0.0
    %179 = vmatpush.msra.mxu0 0.0
    %180 = vmatpush.msra.mxu0 0.0
    %181 = vmatpush.msra.mxu0 0.0
    %182 = vmatpush.msra.mxu0 0.0
    %183 = vmatpush.msra.mxu0 0.0
    %184 = vmatpush.msra.mxu0 0.0
    %185 = vmatpush.msra.mxu0 0.0
    %186 = vmatpush.msra.mxu0 0.0
    %187 = vmatpush.msra.mxu0 %v161
    %188 = vmatpush.msra.mxu0 %v158
    %189 = vmatpush.msra.mxu0 %v155
    %190 = vmatpush.msra.mxu0 %v152
    %191 = vmatmul.f32.gmra.mxu0 %v164
    %v192 = vpop.f32.mrf.mxu0
    %v193 = vadd.f32 0.0, %v192
    %194 = vmatmul.f32.gmra.mxu0 %v167
    %v195 = vpop.f32.mrf.mxu0
    %v196 = vadd.f32 0.0, %v195
    %197 = vmatmul.f32.gmra.mxu0 %v170
    %v198 = vpop.f32.mrf.mxu0
    %v199 = vadd.f32 0.0, %v198
    %200 = vmatmul.f32.gmra.mxu0 %v173
    %v201 = vpop.f32.mrf.mxu0
    %v202 = vadd.f32 0.0, %v201
    %203 = vdwg.mxu0
    %vm204 = vcmask 64512
    %v206 = vsel %vm204, %v193, 0
    %v209 = vsel %vm204, %v196, 0
    %v212 = vsel %vm204, %v199, 0
    %v215 = vsel %vm204, %v202, 0
    %217 = vmatpush.msra.mxu0 0.0
    %218 = vmatpush.msra.mxu0 0.0
    %219 = vmatpush.msra.mxu0 0.0
    %220 = vmatpush.msra.mxu0 0.0
    %221 = vmatpush.msra.mxu0 0.0
    %222 = vmatpush.msra.mxu0 0.0
    %223 = vmatpush.msra.mxu0 0.0
    %224 = vmatpush.msra.mxu0 0.0
    %225 = vmatpush.msra.mxu0 0.0
    %226 = vmatpush.msra.mxu0 0.0
    %227 = vmatpush.msra.mxu0 0.0
    %228 = vmatpush.msra.mxu0 0.0
    %229 = vmatpush.msra.mxu0 0.0
    %230 = vmatpush.msra.mxu0 0.0
    %231 = vmatpush.msra.mxu0 0.0
    %232 = vmatpush.msra.mxu0 %v83
    %233 = vmatmul.f32.gmra.mxu0 %v206
    %v234 = vpop.f32.mrf.mxu0
    %v235 = vadd.f32 0.0, %v234
    %236 = vmatmul.f32.gmra.mxu0 %v209
    %v237 = vpop.f32.mrf.mxu0
    %v238 = vadd.f32 0.0, %v237
    %239 = vmatmul.f32.gmra.mxu0 %v212
    %v240 = vpop.f32.mrf.mxu0
    %v241 = vadd.f32 0.0, %v240
    %242 = vmatmul.f32.gmra.mxu0 %v215
    %v243 = vpop.f32.mrf.mxu0
    %v244 = vadd.f32 0.0, %v243
    %245 = vdwg.mxu0
    %v246 = vsub.f32 %v61, %v235
    %v247 = vsub.f32 %v62, %v238
    %v248 = vsub.f32 %v63, %v241
    %v249 = vsub.f32 %v64, %v244
    %v250 = vmul.f32 %v246, %v246
    %v251 = vmul.f32 %v247, %v247
    %v252 = vmul.f32 %v248, %v248
    %v253 = vmul.f32 %v249, %v249
    %254 = vmatpush.msra.mxu0 0.0
    %255 = vmatpush.msra.mxu0 0.0
    %256 = vmatpush.msra.mxu0 0.0
    %257 = vmatpush.msra.mxu0 0.0
    %258 = vmatpush.msra.mxu0 0.0
    %259 = vmatpush.msra.mxu0 0.0
    %260 = vmatpush.msra.mxu0 0.0
    %261 = vmatpush.msra.mxu0 0.0
    %262 = vmatpush.msra.mxu0 0.0
    %263 = vmatpush.msra.mxu0 0.0
    %264 = vmatpush.msra.mxu0 0.0
    %265 = vmatpush.msra.mxu0 0.0
    %266 = vmatpush.msra.mxu0 %v253
    %267 = vmatpush.msra.mxu0 %v252
    %268 = vmatpush.msra.mxu0 %v251
    %269 = vmatpush.msra.mxu0 %v250
    %270 = vmatmul.f32.gmra.mxu0 %v94
    %v271 = vpop.f32.mrf.mxu0
    %v272 = vadd.f32 0.0, %v271
    %273 = vmatmul.f32.gmra.mxu0 %v97
    %v274 = vpop.f32.mrf.mxu0
    %v275 = vadd.f32 0.0, %v274
    %276 = vmatmul.f32.gmra.mxu0 %v100
    %v277 = vpop.f32.mrf.mxu0
    %v278 = vadd.f32 0.0, %v277
    %279 = vmatmul.f32.gmra.mxu0 %v103
    %v280 = vpop.f32.mrf.mxu0
    %v281 = vadd.f32 0.0, %v280
    %282 = vdwg.mxu0
    %283 = vmatpush.msra.mxu0 %v82
    %284 = vmatpush.msra.mxu0 %v81
    %285 = vmatpush.msra.mxu0 %v80
    %286 = vmatpush.msra.mxu0 %v79
    %287 = vmatpush.msra.mxu0 %v78
    %288 = vmatpush.msra.mxu0 %v77
    %289 = vmatpush.msra.mxu0 %v76
    %290 = vmatpush.msra.mxu0 %v75
    %291 = vmatpush.msra.mxu0 %v74
    %292 = vmatpush.msra.mxu0 %v73
    %293 = vmatpush.msra.mxu0 %v72
    %294 = vmatpush.msra.mxu0 %v71
    %295 = vmatpush.msra.mxu0 %v70
    %296 = vmatpush.msra.mxu0 %v69
    %297 = vmatpush.msra.mxu0 %v68
    %298 = vmatpush.msra.mxu0 %v67
    %299 = vmatmul.f32.gmra.mxu0 %v272
    %v300 = vpop.f32.mrf.mxu0
    %v301 = vadd.f32 0.0, %v300
    %302 = vmatmul.f32.gmra.mxu0 %v275
    %v303 = vpop.f32.mrf.mxu0
    %v304 = vadd.f32 0.0, %v303
    %305 = vmatmul.f32.gmra.mxu0 %v278
    %v306 = vpop.f32.mrf.mxu0
    %v307 = vadd.f32 0.0, %v306
    %308 = vmatmul.f32.gmra.mxu0 %v281
    %v309 = vpop.f32.mrf.mxu0
    %v310 = vadd.f32 0.0, %v309
    %311 = vdwg.mxu0
    %312 = vmatpush.msra.mxu0 0.0
    %313 = vmatpush.msra.mxu0 0.0
    %314 = vmatpush.msra.mxu0 0.0
    %315 = vmatpush.msra.mxu0 0.0
    %316 = vmatpush.msra.mxu0 0.0
    %317 = vmatpush.msra.mxu0 0.0
    %318 = vmatpush.msra.mxu0 0.0
    %319 = vmatpush.msra.mxu0 0.0
    %320 = vmatpush.msra.mxu0 0.0
    %321 = vmatpush.msra.mxu0 0.0
    %322 = vmatpush.msra.mxu0 0.0
    %323 = vmatpush.msra.mxu0 0.0
    %324 = vmatpush.msra.mxu0 %v310
    %325 = vmatpush.msra.mxu0 %v307
    %326 = vmatpush.msra.mxu0 %v304
    %327 = vmatpush.msra.mxu0 %v301
    %328 = vmatmul.f32.gmra.mxu0 %v164
    %v329 = vpop.f32.mrf.mxu0
    %v330 = vadd.f32 0.0, %v329
    %331 = vmatmul.f32.gmra.mxu0 %v167
    %v332 = vpop.f32.mrf.mxu0
    %v333 = vadd.f32 0.0, %v332
    %334 = vmatmul.f32.gmra.mxu0 %v170
    %v335 = vpop.f32.mrf.mxu0
    %v336 = vadd.f32 0.0, %v335
    %337 = vmatmul.f32.gmra.mxu0 %v173
    %v338 = vpop.f32.mrf.mxu0
    %v339 = vadd.f32 0.0, %v338
    %340 = vdwg.mxu0
    %v342 = vsel %vm204, %v330, 0
    %v345 = vsel %vm204, %v333, 0
    %v348 = vsel %vm204, %v336, 0
    %v351 = vsel %vm204, %v339, 0
    %353 = vmatpush.msra.mxu0 0.0
    %354 = vmatpush.msra.mxu0 0.0
    %355 = vmatpush.msra.mxu0 0.0
    %356 = vmatpush.msra.mxu0 0.0
    %357 = vmatpush.msra.mxu0 0.0
    %358 = vmatpush.msra.mxu0 0.0
    %359 = vmatpush.msra.mxu0 0.0
    %360 = vmatpush.msra.mxu0 0.0
    %361 = vmatpush.msra.mxu0 0.0
    %362 = vmatpush.msra.mxu0 0.0
    %363 = vmatpush.msra.mxu0 0.0
    %364 = vmatpush.msra.mxu0 0.0
    %365 = vmatpush.msra.mxu0 0.0
    %366 = vmatpush.msra.mxu0 0.0
    %367 = vmatpush.msra.mxu0 0.0
    %368 = vmatpush.msra.mxu0 %v83
    %369 = vmatmul.f32.gmra.mxu0 %v342
    %v370 = vpop.f32.mrf.mxu0
    %v371 = vadd.f32 1e-05, %v370
    %372 = vmatmul.f32.gmra.mxu0 %v345
    %v373 = vpop.f32.mrf.mxu0
    %v374 = vadd.f32 1e-05, %v373
    %375 = vmatmul.f32.gmra.mxu0 %v348
    %v376 = vpop.f32.mrf.mxu0
    %v377 = vadd.f32 1e-05, %v376
    %378 = vmatmul.f32.gmra.mxu0 %v351
    %v379 = vpop.f32.mrf.mxu0
    %v380 = vadd.f32 1e-05, %v379
    %381 = vdwg.mxu0
    %v382 = vrsqrt.pop %v371
    %v383 = vmul.f32 %v382, %v371
    %v384 = vmul.f32 %v383, %v382
    %v385 = vmul.f32 0.5, %v384
    %v386 = vsub.f32 1.5, %v385
    %v387 = vmul.f32 %v382, %v386
    %vm388 = vweird.f32 %v371
    %vm389 = vweird.f32 %v382
    %vm390 = vmor %vm388, %vm389
    %v391 = vsel %vm390, %v382, %v387
    %v392 = vrsqrt.pop %v374
    %v393 = vmul.f32 %v392, %v374
    %v394 = vmul.f32 %v393, %v392
    %v395 = vmul.f32 0.5, %v394
    %v396 = vsub.f32 1.5, %v395
    %v397 = vmul.f32 %v392, %v396
    %vm398 = vweird.f32 %v374
    %vm399 = vweird.f32 %v392
    %vm400 = vmor %vm398, %vm399
    %v401 = vsel %vm400, %v392, %v397
    %v402 = vrsqrt.pop %v377
    %v403 = vmul.f32 %v402, %v377
    %v404 = vmul.f32 %v403, %v402
    %v405 = vmul.f32 0.5, %v404
    %v406 = vsub.f32 1.5, %v405
    %v407 = vmul.f32 %v402, %v406
    %vm408 = vweird.f32 %v377
    %vm409 = vweird.f32 %v402
    %vm410 = vmor %vm408, %vm409
    %v411 = vsel %vm410, %v402, %v407
    %v412 = vrsqrt.pop %v380
    %v413 = vmul.f32 %v412, %v380
    %v414 = vmul.f32 %v413, %v412
    %v415 = vmul.f32 0.5, %v414
    %v416 = vsub.f32 1.5, %v415
    %v417 = vmul.f32 %v412, %v416
    %vm418 = vweird.f32 %v380
    %vm419 = vweird.f32 %v412
    %vm420 = vmor %vm418, %vm419
    %v421 = vsel %vm420, %v412, %v417
    %v422 = vmul.f32 %v246, %v391
    %v423 = vmul.f32 %v247, %v401
    %v424 = vmul.f32 %v248, %v411
    %v425 = vmul.f32 %v249, %v421
    %v426 = vld [vmem:[%s8] sm:$0xff]
    %v427 = vld [vmem:[%s8 + $0x8] sm:$0xff]
    %v428 = vld [vmem:[%s8 + $0x10] sm:$0xff]
    %v429 = vld [vmem:[%s8 + $0x18] sm:$0xff]
    %431 = vset.pattern.permute.xlu0 0
    %432 = vperm.xlu0 %431, %v426
    %v433 = vpop.permute.xlu0 %432
    %436 = vset.pattern.permute.xlu0 0
    %437 = vperm.xlu0 %436, %v427
    %v438 = vpop.permute.xlu0 %437
    %441 = vset.pattern.permute.xlu0 0
    %442 = vperm.xlu0 %441, %v428
    %v443 = vpop.permute.xlu0 %442
    %446 = vset.pattern.permute.xlu0 0
    %447 = vperm.xlu0 %446, %v429
    %v448 = vpop.permute.xlu0 %447
    %v450 = vmul.f32 %v422, %v433
    %v451 = vmul.f32 %v423, %v438
    %v452 = vmul.f32 %v424, %v443
    %v453 = vmul.f32 %v425, %v448
    %v454 = vld [vmem:[%s9] sm:$0xff]
    %v455 = vld [vmem:[%s9 + $0x8] sm:$0xff]
    %v456 = vld [vmem:[%s9 + $0x10] sm:$0xff]
    %v457 = vld [vmem:[%s9 + $0x18] sm:$0xff]
    %459 = vset.pattern.permute.xlu0 0
    %460 = vperm.xlu0 %459, %v454
    %v461 = vpop.permute.xlu0 %460
    %464 = vset.pattern.permute.xlu0 0
    %465 = vperm.xlu0 %464, %v455
    %v466 = vpop.permute.xlu0 %465
    %469 = vset.pattern.permute.xlu0 0
    %470 = vperm.xlu0 %469, %v456
    %v471 = vpop.permute.xlu0 %470
    %474 = vset.pattern.permute.xlu0 0
    %475 = vperm.xlu0 %474, %v457
    %v476 = vpop.permute.xlu0 %475
    %v478 = vadd.f32 %v450, %v461
    %v479 = vadd.f32 %v451, %v466
    %v480 = vadd.f32 %v452, %v471
    %v481 = vadd.f32 %v453, %v476
    %v482 = vxor.u32 %v478, 2147483648
    %v483 = vxor.u32 %v479, 2147483648
    %v484 = vxor.u32 %v480, 2147483648
    %v485 = vxor.u32 %v481, 2147483648
    %v486 = vmul.f32 %v482, 1.442695
    %v487 = vpow.pop %v486
    %v488 = vmul.f32 %v483, 1.442695
    %v489 = vpow.pop %v488
    %v490 = vmul.f32 %v484, 1.442695
    %v491 = vpow.pop %v490
    %v492 = vmul.f32 %v485, 1.442695
    %v493 = vpow.pop %v492
    %v494 = vadd.f32 %v487, 1.0
    %v495 = vadd.f32 %v489, 1.0
    %v496 = vadd.f32 %v491, 1.0
    %v497 = vadd.f32 %v493, 1.0
    %v498 = vrcp.pop %v494
    %v499 = vmul.f32 %v494, %v498
    %v500 = vsub.f32 1.0, %v499
    %v501 = vmul.f32 %v498, %v500
    %v502 = vadd.f32 %v498, %v501
    %vm503 = vweird.f32 %v494
    %vm504 = vweird.f32 %v498
    %vm505 = vmor %vm503, %vm504
    %v506 = vsel %vm505, %v498, %v502
    %v507 = vand.u32 2147483647, %v494
    %vm508 = vcmp.eq.f32.partialorder %v507, 8.507059e+37
    %v509 = vand.u32 %v494, 2147483648
    %v510 = vor.u32 1.1754944e-38, %v509
    %v511 = vsel %vm508, %v510, %v506
    %v512 = vmul.f32 1.0, %v511
    %v513 = vrcp.pop %v495
    %v514 = vmul.f32 %v495, %v513
    %v515 = vsub.f32 1.0, %v514
    %v516 = vmul.f32 %v513, %v515
    %v517 = vadd.f32 %v513, %v516
    %vm518 = vweird.f32 %v495
    %vm519 = vweird.f32 %v513
    %vm520 = vmor %vm518, %vm519
    %v521 = vsel %vm520, %v513, %v517
    %v522 = vand.u32 2147483647, %v495
    %vm523 = vcmp.eq.f32.partialorder %v522, 8.507059e+37
    %v524 = vand.u32 %v495, 2147483648
    %v525 = vor.u32 1.1754944e-38, %v524
    %v526 = vsel %vm523, %v525, %v521
    %v527 = vmul.f32 1.0, %v526
    %v528 = vrcp.pop %v496
    %v529 = vmul.f32 %v496, %v528
    %v530 = vsub.f32 1.0, %v529
    %v531 = vmul.f32 %v528, %v530
    %v532 = vadd.f32 %v528, %v531
    %vm533 = vweird.f32 %v496
    %vm534 = vweird.f32 %v528
    %vm535 = vmor %vm533, %vm534
    %v536 = vsel %vm535, %v528, %v532
    %v537 = vand.u32 2147483647, %v496
    %vm538 = vcmp.eq.f32.partialorder %v537, 8.507059e+37
    %v539 = vand.u32 %v496, 2147483648
    %v540 = vor.u32 1.1754944e-38, %v539
    %v541 = vsel %vm538, %v540, %v536
    %v542 = vmul.f32 1.0, %v541
    %v543 = vrcp.pop %v497
    %v544 = vmul.f32 %v497, %v543
    %v545 = vsub.f32 1.0, %v544
    %v546 = vmul.f32 %v543, %v545
    %v547 = vadd.f32 %v543, %v546
    %vm548 = vweird.f32 %v497
    %vm549 = vweird.f32 %v543
    %vm550 = vmor %vm548, %vm549
    %v551 = vsel %vm550, %v543, %v547
    %v552 = vand.u32 2147483647, %v497
    %vm553 = vcmp.eq.f32.partialorder %v552, 8.507059e+37
    %v554 = vand.u32 %v497, 2147483648
    %v555 = vor.u32 1.1754944e-38, %v554
    %v556 = vsel %vm553, %v555, %v551
    %v557 = vmul.f32 1.0, %v556
    %v558 = vmul.f32 %v478, %v512
    %v559 = vmul.f32 %v479, %v527
    %v560 = vmul.f32 %v480, %v542
    %v561 = vmul.f32 %v481, %v557
    %v562 = vld [vmem:[%s10] sm:$0xf]
    %v563 = vld [vmem:[%s10 + $0x4] sm:$0xf]
    %v564 = vld [vmem:[%s10 + $0x8] sm:$0xf]
    %v565 = vld [vmem:[%s10 + $0xc] sm:$0xf]
    %v566 = vld [vmem:[%s10 + $0x10] sm:$0xf]
    %v567 = vld [vmem:[%s10 + $0x14] sm:$0xf]
    %v568 = vld [vmem:[%s10 + $0x18] sm:$0xf]
    %v569 = vld [vmem:[%s10 + $0x1c] sm:$0xf]
    %570 = vrot.lane.b32.xlu0 %v558, 1
    %v571 = vpop.permute.xlu0 %570
    %572 = vrot.lane.b32.xlu0 %v559, 1
    %v573 = vpop.permute.xlu0 %572
    %574 = vrot.lane.b32.xlu0 %v560, 1
    %v575 = vpop.permute.xlu0 %574
    %576 = vrot.lane.b32.xlu0 %v561, 1
    %v577 = vpop.permute.xlu0 %576
    %v579 = vperm.slane %v65, 0
    %v581 = vmul.f32 %v571, %v579
    %v582 = vmul.f32 %v573, %v579
    %v583 = vmul.f32 %v575, %v579
    %v584 = vmul.f32 %v577, %v579
    %v585 = vpack.c.bf16 %v581, %v581
    %v586 = vpack.c.bf16 %v582, %v582
    %v587 = vpack.c.bf16 %v583, %v583
    %v588 = vpack.c.bf16 %v584, %v584
    %589 = vrot.lane.b32.xlu0 %v558, 127
    %v590 = vpop.permute.xlu0 %589
    %591 = vrot.lane.b32.xlu0 %v559, 127
    %v592 = vpop.permute.xlu0 %591
    %593 = vrot.lane.b32.xlu0 %v560, 127
    %v594 = vpop.permute.xlu0 %593
    %595 = vrot.lane.b32.xlu0 %v561, 127
    %v596 = vpop.permute.xlu0 %595
    %v598 = vperm.slane %v66, 0
    %v600 = vmul.f32 %v590, %v598
    %v601 = vmul.f32 %v592, %v598
    %v602 = vmul.f32 %v594, %v598
    %v603 = vmul.f32 %v596, %v598
    %v604 = vpack.c.bf16 %v600, %v600
    %v605 = vpack.c.bf16 %v601, %v601
    %v606 = vpack.c.bf16 %v602, %v602
    %v607 = vpack.c.bf16 %v603, %v603
    %v608 = vpack.c.bf16 %v558, %v558
    %v609 = vpack.c.bf16 %v559, %v559
    %v610 = vpack.c.bf16 %v560, %v560
    %v611 = vpack.c.bf16 %v561, %v561
    %v616 = vunpack.c.l.b16 %v585
    %v617 = vunpack.c.l.b16 %v586
    %v618 = vunpack.c.l.b16 %v587
    %v619 = vunpack.c.l.b16 %v588
    %v620 = vpack.c.b16 %v617, %v616
    %v621 = vpack.c.b16 %v619, %v618
    %v628 = vunpack.c.l.b16 %v608
    %v629 = vunpack.c.l.b16 %v609
    %v630 = vunpack.c.l.b16 %v610
    %v631 = vunpack.c.l.b16 %v611
    %v632 = vpack.c.b16 %v629, %v628
    %v633 = vpack.c.b16 %v631, %v630
    %v640 = vunpack.c.l.b16 %v604
    %v641 = vunpack.c.l.b16 %v605
    %v642 = vunpack.c.l.b16 %v606
    %v643 = vunpack.c.l.b16 %v607
    %v644 = vpack.c.b16 %v641, %v640
    %v645 = vpack.c.b16 %v643, %v642
    %v648 = vld [vmem:[%s11] sm:$0xff]
    %v649 = vld [vmem:[%s11 + $0x8] sm:$0xff]
    %v650 = vld [vmem:[%s11 + $0x10] sm:$0xff]
    %v651 = vld [vmem:[%s11 + $0x18] sm:$0xff]
    %v652 = vld [vmem:[%s11 + $0x20] sm:$0xff]
    %v653 = vld [vmem:[%s11 + $0x28] sm:$0xff]
    %v654 = vld [vmem:[%s11 + $0x30] sm:$0xff]
    %v655 = vld [vmem:[%s11 + $0x38] sm:$0xff]
    %657 = vset.pattern.permute.xlu0 0
    %658 = vperm.xlu0 %657, %v648
    %v659 = vpop.permute.xlu0 %658
    %662 = vset.pattern.permute.xlu0 0
    %663 = vperm.xlu0 %662, %v649
    %v664 = vpop.permute.xlu0 %663
    %667 = vset.pattern.permute.xlu0 0
    %668 = vperm.xlu0 %667, %v650
    %v669 = vpop.permute.xlu0 %668
    %672 = vset.pattern.permute.xlu0 0
    %673 = vperm.xlu0 %672, %v651
    %v674 = vpop.permute.xlu0 %673
    %677 = vset.pattern.permute.xlu0 0
    %678 = vperm.xlu0 %677, %v652
    %v679 = vpop.permute.xlu0 %678
    %682 = vset.pattern.permute.xlu0 0
    %683 = vperm.xlu0 %682, %v653
    %v684 = vpop.permute.xlu0 %683
    %687 = vset.pattern.permute.xlu0 0
    %688 = vperm.xlu0 %687, %v654
    %v689 = vpop.permute.xlu0 %688
    %692 = vset.pattern.permute.xlu0 0
    %693 = vperm.xlu0 %692, %v655
    %v694 = vpop.permute.xlu0 %693
    %v704 = vunpack.c.l.b16 %v562
    %v705 = vunpack.c.l.b16 %v563
    %v706 = vunpack.c.l.b16 %v564
    %v707 = vunpack.c.l.b16 %v565
    %v708 = vunpack.c.l.b16 %v566
    %v709 = vunpack.c.l.b16 %v567
    %v710 = vunpack.c.l.b16 %v568
    %v711 = vunpack.c.l.b16 %v569
    %v712 = vpack.c.b16 %v705, %v704
    %v713 = vpack.c.b16 %v707, %v706
    %v714 = vpack.c.b16 %v709, %v708
    %v715 = vpack.c.b16 %v711, %v710
    %vm716 = vcmask 785408
    %v718 = vsel %vm716, %v712, 0
    %v721 = vsel %vm716, %v713, 0
    %v724 = vsel %vm716, %v714, 0
    %v727 = vsel %vm716, %v715, 0
    %729 = vmatpush.bf16.msra.mxu0 0
    %730 = vmatpush.bf16.msra.mxu0 0
    %731 = vmatpush.bf16.msra.mxu0 %v645
    %732 = vmatpush.bf16.msra.mxu0 %v644
    %733 = vmatpush.bf16.msra.mxu0 %v633
    %734 = vmatpush.bf16.msra.mxu0 %v632
    %735 = vmatpush.bf16.msra.mxu0 %v621
    %736 = vmatpush.bf16.msra.mxu0 %v620
    %737 = vmatmul.bf16.gmra.mxu0 %v718
    %v738 = vpop.f32.mrf.mxu0
    %v739 = vadd.f32 %v659, %v738
    %v740 = vpop.f32.mrf.mxu0
    %v741 = vadd.f32 %v664, %v740
    %742 = vmatmul.bf16.gmra.mxu0 %v721
    %v743 = vpop.f32.mrf.mxu0
    %v744 = vadd.f32 %v669, %v743
    %v745 = vpop.f32.mrf.mxu0
    %v746 = vadd.f32 %v674, %v745
    %747 = vmatmul.bf16.gmra.mxu0 %v724
    %v748 = vpop.f32.mrf.mxu0
    %v749 = vadd.f32 %v679, %v748
    %v750 = vpop.f32.mrf.mxu0
    %v751 = vadd.f32 %v684, %v750
    %752 = vmatmul.bf16.gmra.mxu0 %v727
    %v753 = vpop.f32.mrf.mxu0
    %v754 = vadd.f32 %v689, %v753
    %v755 = vpop.f32.mrf.mxu0
    %v756 = vadd.f32 %v694, %v755
    %757 = vdwg.mxu0
    %v758 = vld [vmem:[%s1] sm:$0xff]
    %v759 = vld [vmem:[%s1 + $0x8] sm:$0xff]
    %v760 = vld [vmem:[%s1 + $0x10] sm:$0xff]
    %v761 = vld [vmem:[%s1 + $0x18] sm:$0xff]
    %v762 = vld [vmem:[%s1 + $0x20] sm:$0xff]
    %v763 = vld [vmem:[%s1 + $0x28] sm:$0xff]
    %v764 = vld [vmem:[%s1 + $0x30] sm:$0xff]
    %v765 = vld [vmem:[%s1 + $0x38] sm:$0xff]
    %v766 = vadd.f32 %v739, %v758
    %v767 = vadd.f32 %v741, %v759
    %v768 = vadd.f32 %v744, %v760
    %v769 = vadd.f32 %v746, %v761
    %v770 = vadd.f32 %v749, %v762
    %v771 = vadd.f32 %v751, %v763
    %v772 = vadd.f32 %v754, %v764
    %v773 = vadd.f32 %v756, %v765
    %v774 = vld [vmem:[%s12] sm:$0xff]
    %v775 = vld [vmem:[%s12 + $0x8] sm:$0xff]
    %v776 = vld [vmem:[%s12 + $0x10] sm:$0xff]
    %v777 = vld [vmem:[%s12 + $0x18] sm:$0xff]
    %v778 = vld [vmem:[%s13] sm:$0xff]
    %v779 = vld [vmem:[%s13 + $0x8] sm:$0xff]
    %v780 = vld [vmem:[%s13 + $0x10] sm:$0xff]
    %v781 = vld [vmem:[%s13 + $0x18] sm:$0xff]
    %v782 = vld [vmem:[%s13 + $0x20] sm:$0xff]
    %v783 = vld [vmem:[%s13 + $0x28] sm:$0xff]
    %v784 = vld [vmem:[%s13 + $0x30] sm:$0xff]
    %v785 = vld [vmem:[%s13 + $0x38] sm:$0xff]
    %vm786 = vcmask 523264
    %v788 = vsel %vm786, %v774, 0
    %v791 = vsel %vm786, %v775, 0
    %v794 = vsel %vm786, %v776, 0
    %v797 = vsel %vm786, %v777, 0
    %799 = vmatpush.msra.mxu0 0.0
    %800 = vmatpush.msra.mxu0 0.0
    %801 = vmatpush.msra.mxu0 0.0
    %802 = vmatpush.msra.mxu0 0.0
    %803 = vmatpush.msra.mxu0 0.0
    %804 = vmatpush.msra.mxu0 0.0
    %805 = vmatpush.msra.mxu0 0.0
    %806 = vmatpush.msra.mxu0 0.0
    %807 = vmatpush.msra.mxu0 %v773
    %808 = vmatpush.msra.mxu0 %v772
    %809 = vmatpush.msra.mxu0 %v771
    %810 = vmatpush.msra.mxu0 %v770
    %811 = vmatpush.msra.mxu0 %v769
    %812 = vmatpush.msra.mxu0 %v768
    %813 = vmatpush.msra.mxu0 %v767
    %814 = vmatpush.msra.mxu0 %v766
    %815 = vmatmul.f32.gmra.mxu0 %v788
    %v816 = vpop.f32.mrf.mxu0
    %v817 = vadd.f32 0.0, %v816
    %818 = vmatmul.f32.gmra.mxu0 %v791
    %v819 = vpop.f32.mrf.mxu0
    %v820 = vadd.f32 0.0, %v819
    %821 = vmatmul.f32.gmra.mxu0 %v794
    %v822 = vpop.f32.mrf.mxu0
    %v823 = vadd.f32 0.0, %v822
    %824 = vmatmul.f32.gmra.mxu0 %v797
    %v825 = vpop.f32.mrf.mxu0
    %v826 = vadd.f32 0.0, %v825
    %827 = vdwg.mxu0
    %828 = vmatpush.msra.mxu0 %v82
    %829 = vmatpush.msra.mxu0 %v81
    %830 = vmatpush.msra.mxu0 %v80
    %831 = vmatpush.msra.mxu0 %v79
    %832 = vmatpush.msra.mxu0 %v78
    %833 = vmatpush.msra.mxu0 %v77
    %834 = vmatpush.msra.mxu0 %v76
    %835 = vmatpush.msra.mxu0 %v75
    %836 = vmatpush.msra.mxu0 %v74
    %837 = vmatpush.msra.mxu0 %v73
    %838 = vmatpush.msra.mxu0 %v72
    %839 = vmatpush.msra.mxu0 %v71
    %840 = vmatpush.msra.mxu0 %v70
    %841 = vmatpush.msra.mxu0 %v69
    %842 = vmatpush.msra.mxu0 %v68
    %843 = vmatpush.msra.mxu0 %v67
    %844 = vmatmul.f32.gmra.mxu0 %v817
    %v845 = vpop.f32.mrf.mxu0
    %v846 = vadd.f32 0.0, %v845
    %847 = vmatmul.f32.gmra.mxu0 %v820
    %v848 = vpop.f32.mrf.mxu0
    %v849 = vadd.f32 0.0, %v848
    %850 = vmatmul.f32.gmra.mxu0 %v823
    %v851 = vpop.f32.mrf.mxu0
    %v852 = vadd.f32 0.0, %v851
    %853 = vmatmul.f32.gmra.mxu0 %v826
    %v854 = vpop.f32.mrf.mxu0
    %v855 = vadd.f32 0.0, %v854
    %856 = vdwg.mxu0
    %v858 = vsel %vm92, %v778, 0
    %v861 = vsel %vm92, %v779, 0
    %v864 = vsel %vm92, %v780, 0
    %v867 = vsel %vm92, %v781, 0
    %v870 = vsel %vm92, %v782, 0
    %v873 = vsel %vm92, %v783, 0
    %v876 = vsel %vm92, %v784, 0
    %v879 = vsel %vm92, %v785, 0
    %881 = vmatpush.msra.mxu0 0.0
    %882 = vmatpush.msra.mxu0 0.0
    %883 = vmatpush.msra.mxu0 0.0
    %884 = vmatpush.msra.mxu0 0.0
    %885 = vmatpush.msra.mxu0 0.0
    %886 = vmatpush.msra.mxu0 0.0
    %887 = vmatpush.msra.mxu0 0.0
    %888 = vmatpush.msra.mxu0 0.0
    %889 = vmatpush.msra.mxu0 0.0
    %890 = vmatpush.msra.mxu0 0.0
    %891 = vmatpush.msra.mxu0 0.0
    %892 = vmatpush.msra.mxu0 0.0
    %893 = vmatpush.msra.mxu0 %v855
    %894 = vmatpush.msra.mxu0 %v852
    %895 = vmatpush.msra.mxu0 %v849
    %896 = vmatpush.msra.mxu0 %v846
    %897 = vmatmul.f32.gmra.mxu0 %v858
    %v898 = vpop.f32.mrf.mxu0
    %v899 = vadd.f32 0.0, %v898
    %900 = vmatmul.f32.gmra.mxu0 %v861
    %v901 = vpop.f32.mrf.mxu0
    %v902 = vadd.f32 0.0, %v901
    %903 = vmatmul.f32.gmra.mxu0 %v864
    %v904 = vpop.f32.mrf.mxu0
    %v905 = vadd.f32 0.0, %v904
    %906 = vmatmul.f32.gmra.mxu0 %v867
    %v907 = vpop.f32.mrf.mxu0
    %v908 = vadd.f32 0.0, %v907
    %909 = vmatmul.f32.gmra.mxu0 %v870
    %v910 = vpop.f32.mrf.mxu0
    %v911 = vadd.f32 0.0, %v910
    %912 = vmatmul.f32.gmra.mxu0 %v873
    %v913 = vpop.f32.mrf.mxu0
    %v914 = vadd.f32 0.0, %v913
    %915 = vmatmul.f32.gmra.mxu0 %v876
    %v916 = vpop.f32.mrf.mxu0
    %v917 = vadd.f32 0.0, %v916
    %918 = vmatmul.f32.gmra.mxu0 %v879
    %v919 = vpop.f32.mrf.mxu0
    %v920 = vadd.f32 0.0, %v919
    %921 = vdwg.mxu0
    %v923 = vsel %vm204, %v899, 0
    %v926 = vsel %vm204, %v902, 0
    %v929 = vsel %vm204, %v905, 0
    %v932 = vsel %vm204, %v908, 0
    %v935 = vsel %vm204, %v911, 0
    %v938 = vsel %vm204, %v914, 0
    %v941 = vsel %vm204, %v917, 0
    %v944 = vsel %vm204, %v920, 0
    %946 = vmatpush.msra.mxu0 0.0
    %947 = vmatpush.msra.mxu0 0.0
    %948 = vmatpush.msra.mxu0 0.0
    %949 = vmatpush.msra.mxu0 0.0
    %950 = vmatpush.msra.mxu0 0.0
    %951 = vmatpush.msra.mxu0 0.0
    %952 = vmatpush.msra.mxu0 0.0
    %953 = vmatpush.msra.mxu0 0.0
    %954 = vmatpush.msra.mxu0 0.0
    %955 = vmatpush.msra.mxu0 0.0
    %956 = vmatpush.msra.mxu0 0.0
    %957 = vmatpush.msra.mxu0 0.0
    %958 = vmatpush.msra.mxu0 0.0
    %959 = vmatpush.msra.mxu0 0.0
    %960 = vmatpush.msra.mxu0 0.0
    %961 = vmatpush.msra.mxu0 %v83
    %962 = vmatmul.f32.gmra.mxu0 %v923
    %v963 = vpop.f32.mrf.mxu0
    %v964 = vadd.f32 0.0, %v963
    %965 = vmatmul.f32.gmra.mxu0 %v926
    %v966 = vpop.f32.mrf.mxu0
    %v967 = vadd.f32 0.0, %v966
    %968 = vmatmul.f32.gmra.mxu0 %v929
    %v969 = vpop.f32.mrf.mxu0
    %v970 = vadd.f32 0.0, %v969
    %971 = vmatmul.f32.gmra.mxu0 %v932
    %v972 = vpop.f32.mrf.mxu0
    %v973 = vadd.f32 0.0, %v972
    %974 = vmatmul.f32.gmra.mxu0 %v935
    %v975 = vpop.f32.mrf.mxu0
    %v976 = vadd.f32 0.0, %v975
    %977 = vmatmul.f32.gmra.mxu0 %v938
    %v978 = vpop.f32.mrf.mxu0
    %v979 = vadd.f32 0.0, %v978
    %980 = vmatmul.f32.gmra.mxu0 %v941
    %v981 = vpop.f32.mrf.mxu0
    %v982 = vadd.f32 0.0, %v981
    %983 = vmatmul.f32.gmra.mxu0 %v944
    %v984 = vpop.f32.mrf.mxu0
    %v985 = vadd.f32 0.0, %v984
    %986 = vdwg.mxu0
    %v987 = vsub.f32 %v766, %v964
    %v988 = vsub.f32 %v767, %v967
    %v989 = vsub.f32 %v768, %v970
    %v990 = vsub.f32 %v769, %v973
    %v991 = vsub.f32 %v770, %v976
    %v992 = vsub.f32 %v771, %v979
    %v993 = vsub.f32 %v772, %v982
    %v994 = vsub.f32 %v773, %v985
    %v995 = vmul.f32 %v987, %v987
    %v996 = vmul.f32 %v988, %v988
    %v997 = vmul.f32 %v989, %v989
    %v998 = vmul.f32 %v990, %v990
    %v999 = vmul.f32 %v991, %v991
    %v1000 = vmul.f32 %v992, %v992
    %v1001 = vmul.f32 %v993, %v993
    %v1002 = vmul.f32 %v994, %v994
    %1003 = vmatpush.msra.mxu0 0.0
    %1004 = vmatpush.msra.mxu0 0.0
    %1005 = vmatpush.msra.mxu0 0.0
    %1006 = vmatpush.msra.mxu0 0.0
    %1007 = vmatpush.msra.mxu0 0.0
    %1008 = vmatpush.msra.mxu0 0.0
    %1009 = vmatpush.msra.mxu0 0.0
    %1010 = vmatpush.msra.mxu0 0.0
    %1011 = vmatpush.msra.mxu0 %v1002
    %1012 = vmatpush.msra.mxu0 %v1001
    %1013 = vmatpush.msra.mxu0 %v1000
    %1014 = vmatpush.msra.mxu0 %v999
    %1015 = vmatpush.msra.mxu0 %v998
    %1016 = vmatpush.msra.mxu0 %v997
    %1017 = vmatpush.msra.mxu0 %v996
    %1018 = vmatpush.msra.mxu0 %v995
    %1019 = vmatmul.f32.gmra.mxu0 %v788
    %v1020 = vpop.f32.mrf.mxu0
    %v1021 = vadd.f32 0.0, %v1020
    %1022 = vmatmul.f32.gmra.mxu0 %v791
    %v1023 = vpop.f32.mrf.mxu0
    %v1024 = vadd.f32 0.0, %v1023
    %1025 = vmatmul.f32.gmra.mxu0 %v794
    %v1026 = vpop.f32.mrf.mxu0
    %v1027 = vadd.f32 0.0, %v1026
    %1028 = vmatmul.f32.gmra.mxu0 %v797
    %v1029 = vpop.f32.mrf.mxu0
    %v1030 = vadd.f32 0.0, %v1029
    %1031 = vdwg.mxu0
    %1032 = vmatpush.msra.mxu0 %v82
    %1033 = vmatpush.msra.mxu0 %v81
    %1034 = vmatpush.msra.mxu0 %v80
    %1035 = vmatpush.msra.mxu0 %v79
    %1036 = vmatpush.msra.mxu0 %v78
    %1037 = vmatpush.msra.mxu0 %v77
    %1038 = vmatpush.msra.mxu0 %v76
    %1039 = vmatpush.msra.mxu0 %v75
    %1040 = vmatpush.msra.mxu0 %v74
    %1041 = vmatpush.msra.mxu0 %v73
    %1042 = vmatpush.msra.mxu0 %v72
    %1043 = vmatpush.msra.mxu0 %v71
    %1044 = vmatpush.msra.mxu0 %v70
    %1045 = vmatpush.msra.mxu0 %v69
    %1046 = vmatpush.msra.mxu0 %v68
    %1047 = vmatpush.msra.mxu0 %v67
    %1048 = vmatmul.f32.gmra.mxu0 %v1021
    %v1049 = vpop.f32.mrf.mxu0
    %v1050 = vadd.f32 0.0, %v1049
    %1051 = vmatmul.f32.gmra.mxu0 %v1024
    %v1052 = vpop.f32.mrf.mxu0
    %v1053 = vadd.f32 0.0, %v1052
    %1054 = vmatmul.f32.gmra.mxu0 %v1027
    %v1055 = vpop.f32.mrf.mxu0
    %v1056 = vadd.f32 0.0, %v1055
    %1057 = vmatmul.f32.gmra.mxu0 %v1030
    %v1058 = vpop.f32.mrf.mxu0
    %v1059 = vadd.f32 0.0, %v1058
    %1060 = vdwg.mxu0
    %1061 = vmatpush.msra.mxu0 0.0
    %1062 = vmatpush.msra.mxu0 0.0
    %1063 = vmatpush.msra.mxu0 0.0
    %1064 = vmatpush.msra.mxu0 0.0
    %1065 = vmatpush.msra.mxu0 0.0
    %1066 = vmatpush.msra.mxu0 0.0
    %1067 = vmatpush.msra.mxu0 0.0
    %1068 = vmatpush.msra.mxu0 0.0
    %1069 = vmatpush.msra.mxu0 0.0
    %1070 = vmatpush.msra.mxu0 0.0
    %1071 = vmatpush.msra.mxu0 0.0
    %1072 = vmatpush.msra.mxu0 0.0
    %1073 = vmatpush.msra.mxu0 %v1059
    %1074 = vmatpush.msra.mxu0 %v1056
    %1075 = vmatpush.msra.mxu0 %v1053
    %1076 = vmatpush.msra.mxu0 %v1050
    %1077 = vmatmul.f32.gmra.mxu0 %v858
    %v1078 = vpop.f32.mrf.mxu0
    %v1079 = vadd.f32 0.0, %v1078
    %1080 = vmatmul.f32.gmra.mxu0 %v861
    %v1081 = vpop.f32.mrf.mxu0
    %v1082 = vadd.f32 0.0, %v1081
    %1083 = vmatmul.f32.gmra.mxu0 %v864
    %v1084 = vpop.f32.mrf.mxu0
    %v1085 = vadd.f32 0.0, %v1084
    %1086 = vmatmul.f32.gmra.mxu0 %v867
    %v1087 = vpop.f32.mrf.mxu0
    %v1088 = vadd.f32 0.0, %v1087
    %1089 = vmatmul.f32.gmra.mxu0 %v870
    %v1090 = vpop.f32.mrf.mxu0
    %v1091 = vadd.f32 0.0, %v1090
    %1092 = vmatmul.f32.gmra.mxu0 %v873
    %v1093 = vpop.f32.mrf.mxu0
    %v1094 = vadd.f32 0.0, %v1093
    %1095 = vmatmul.f32.gmra.mxu0 %v876
    %v1096 = vpop.f32.mrf.mxu0
    %v1097 = vadd.f32 0.0, %v1096
    %1098 = vmatmul.f32.gmra.mxu0 %v879
    %v1099 = vpop.f32.mrf.mxu0
    %v1100 = vadd.f32 0.0, %v1099
    %1101 = vdwg.mxu0
    %v1103 = vsel %vm204, %v1079, 0
    %v1106 = vsel %vm204, %v1082, 0
    %v1109 = vsel %vm204, %v1085, 0
    %v1112 = vsel %vm204, %v1088, 0
    %v1115 = vsel %vm204, %v1091, 0
    %v1118 = vsel %vm204, %v1094, 0
    %v1121 = vsel %vm204, %v1097, 0
    %v1124 = vsel %vm204, %v1100, 0
    %1126 = vmatpush.msra.mxu0 0.0
    %1127 = vmatpush.msra.mxu0 0.0
    %1128 = vmatpush.msra.mxu0 0.0
    %1129 = vmatpush.msra.mxu0 0.0
    %1130 = vmatpush.msra.mxu0 0.0
    %1131 = vmatpush.msra.mxu0 0.0
    %1132 = vmatpush.msra.mxu0 0.0
    %1133 = vmatpush.msra.mxu0 0.0
    %1134 = vmatpush.msra.mxu0 0.0
    %1135 = vmatpush.msra.mxu0 0.0
    %1136 = vmatpush.msra.mxu0 0.0
    %1137 = vmatpush.msra.mxu0 0.0
    %1138 = vmatpush.msra.mxu0 0.0
    %1139 = vmatpush.msra.mxu0 0.0
    %1140 = vmatpush.msra.mxu0 0.0
    %1141 = vmatpush.msra.mxu0 %v83
    %1142 = vmatmul.f32.gmra.mxu0 %v1103
    %v1143 = vpop.f32.mrf.mxu0
    %v1144 = vadd.f32 1e-05, %v1143
    %1145 = vmatmul.f32.gmra.mxu0 %v1106
    %v1146 = vpop.f32.mrf.mxu0
    %v1147 = vadd.f32 1e-05, %v1146
    %1148 = vmatmul.f32.gmra.mxu0 %v1109
    %v1149 = vpop.f32.mrf.mxu0
    %v1150 = vadd.f32 1e-05, %v1149
    %1151 = vmatmul.f32.gmra.mxu0 %v1112
    %v1152 = vpop.f32.mrf.mxu0
    %v1153 = vadd.f32 1e-05, %v1152
    %1154 = vmatmul.f32.gmra.mxu0 %v1115
    %v1155 = vpop.f32.mrf.mxu0
    %v1156 = vadd.f32 1e-05, %v1155
    %1157 = vmatmul.f32.gmra.mxu0 %v1118
    %v1158 = vpop.f32.mrf.mxu0
    %v1159 = vadd.f32 1e-05, %v1158
    %1160 = vmatmul.f32.gmra.mxu0 %v1121
    %v1161 = vpop.f32.mrf.mxu0
    %v1162 = vadd.f32 1e-05, %v1161
    %1163 = vmatmul.f32.gmra.mxu0 %v1124
    %v1164 = vpop.f32.mrf.mxu0
    %v1165 = vadd.f32 1e-05, %v1164
    %1166 = vdwg.mxu0
    %v1167 = vrsqrt.pop %v1144
    %v1168 = vmul.f32 %v1167, %v1144
    %v1169 = vmul.f32 %v1168, %v1167
    %v1170 = vmul.f32 0.5, %v1169
    %v1171 = vsub.f32 1.5, %v1170
    %v1172 = vmul.f32 %v1167, %v1171
    %vm1173 = vweird.f32 %v1144
    %vm1174 = vweird.f32 %v1167
    %vm1175 = vmor %vm1173, %vm1174
    %v1176 = vsel %vm1175, %v1167, %v1172
    %v1177 = vrsqrt.pop %v1147
    %v1178 = vmul.f32 %v1177, %v1147
    %v1179 = vmul.f32 %v1178, %v1177
    %v1180 = vmul.f32 0.5, %v1179
    %v1181 = vsub.f32 1.5, %v1180
    %v1182 = vmul.f32 %v1177, %v1181
    %vm1183 = vweird.f32 %v1147
    %vm1184 = vweird.f32 %v1177
    %vm1185 = vmor %vm1183, %vm1184
    %v1186 = vsel %vm1185, %v1177, %v1182
    %v1187 = vrsqrt.pop %v1150
    %v1188 = vmul.f32 %v1187, %v1150
    %v1189 = vmul.f32 %v1188, %v1187
    %v1190 = vmul.f32 0.5, %v1189
    %v1191 = vsub.f32 1.5, %v1190
    %v1192 = vmul.f32 %v1187, %v1191
    %vm1193 = vweird.f32 %v1150
    %vm1194 = vweird.f32 %v1187
    %vm1195 = vmor %vm1193, %vm1194
    %v1196 = vsel %vm1195, %v1187, %v1192
    %v1197 = vrsqrt.pop %v1153
    %v1198 = vmul.f32 %v1197, %v1153
    %v1199 = vmul.f32 %v1198, %v1197
    %v1200 = vmul.f32 0.5, %v1199
    %v1201 = vsub.f32 1.5, %v1200
    %v1202 = vmul.f32 %v1197, %v1201
    %vm1203 = vweird.f32 %v1153
    %vm1204 = vweird.f32 %v1197
    %vm1205 = vmor %vm1203, %vm1204
    %v1206 = vsel %vm1205, %v1197, %v1202
    %v1207 = vrsqrt.pop %v1156
    %v1208 = vmul.f32 %v1207, %v1156
    %v1209 = vmul.f32 %v1208, %v1207
    %v1210 = vmul.f32 0.5, %v1209
    %v1211 = vsub.f32 1.5, %v1210
    %v1212 = vmul.f32 %v1207, %v1211
    %vm1213 = vweird.f32 %v1156
    %vm1214 = vweird.f32 %v1207
    %vm1215 = vmor %vm1213, %vm1214
    %v1216 = vsel %vm1215, %v1207, %v1212
    %v1217 = vrsqrt.pop %v1159
    %v1218 = vmul.f32 %v1217, %v1159
    %v1219 = vmul.f32 %v1218, %v1217
    %v1220 = vmul.f32 0.5, %v1219
    %v1221 = vsub.f32 1.5, %v1220
    %v1222 = vmul.f32 %v1217, %v1221
    %vm1223 = vweird.f32 %v1159
    %vm1224 = vweird.f32 %v1217
    %vm1225 = vmor %vm1223, %vm1224
    %v1226 = vsel %vm1225, %v1217, %v1222
    %v1227 = vrsqrt.pop %v1162
    %v1228 = vmul.f32 %v1227, %v1162
    %v1229 = vmul.f32 %v1228, %v1227
    %v1230 = vmul.f32 0.5, %v1229
    %v1231 = vsub.f32 1.5, %v1230
    %v1232 = vmul.f32 %v1227, %v1231
    %vm1233 = vweird.f32 %v1162
    %vm1234 = vweird.f32 %v1227
    %vm1235 = vmor %vm1233, %vm1234
    %v1236 = vsel %vm1235, %v1227, %v1232
    %v1237 = vrsqrt.pop %v1165
    %v1238 = vmul.f32 %v1237, %v1165
    %v1239 = vmul.f32 %v1238, %v1237
    %v1240 = vmul.f32 0.5, %v1239
    %v1241 = vsub.f32 1.5, %v1240
    %v1242 = vmul.f32 %v1237, %v1241
    %vm1243 = vweird.f32 %v1165
    %vm1244 = vweird.f32 %v1237
    %vm1245 = vmor %vm1243, %vm1244
    %v1246 = vsel %vm1245, %v1237, %v1242
    %v1247 = vmul.f32 %v987, %v1176
    %v1248 = vmul.f32 %v988, %v1186
    %v1249 = vmul.f32 %v989, %v1196
    %v1250 = vmul.f32 %v990, %v1206
    %v1251 = vmul.f32 %v991, %v1216
    %v1252 = vmul.f32 %v992, %v1226
    %v1253 = vmul.f32 %v993, %v1236
    %v1254 = vmul.f32 %v994, %v1246
    %v1255 = vld [vmem:[%s14] sm:$0xff]
    %v1256 = vld [vmem:[%s14 + $0x8] sm:$0xff]
    %v1257 = vld [vmem:[%s14 + $0x10] sm:$0xff]
    %v1258 = vld [vmem:[%s14 + $0x18] sm:$0xff]
    %v1259 = vld [vmem:[%s14 + $0x20] sm:$0xff]
    %v1260 = vld [vmem:[%s14 + $0x28] sm:$0xff]
    %v1261 = vld [vmem:[%s14 + $0x30] sm:$0xff]
    %v1262 = vld [vmem:[%s14 + $0x38] sm:$0xff]
    %1264 = vset.pattern.permute.xlu0 0
    %1265 = vperm.xlu0 %1264, %v1255
    %v1266 = vpop.permute.xlu0 %1265
    %1269 = vset.pattern.permute.xlu0 0
    %1270 = vperm.xlu0 %1269, %v1256
    %v1271 = vpop.permute.xlu0 %1270
    %1274 = vset.pattern.permute.xlu0 0
    %1275 = vperm.xlu0 %1274, %v1257
    %v1276 = vpop.permute.xlu0 %1275
    %1279 = vset.pattern.permute.xlu0 0
    %1280 = vperm.xlu0 %1279, %v1258
    %v1281 = vpop.permute.xlu0 %1280
    %1284 = vset.pattern.permute.xlu0 0
    %1285 = vperm.xlu0 %1284, %v1259
    %v1286 = vpop.permute.xlu0 %1285
    %1289 = vset.pattern.permute.xlu0 0
    %1290 = vperm.xlu0 %1289, %v1260
    %v1291 = vpop.permute.xlu0 %1290
    %1294 = vset.pattern.permute.xlu0 0
    %1295 = vperm.xlu0 %1294, %v1261
    %v1296 = vpop.permute.xlu0 %1295
    %1299 = vset.pattern.permute.xlu0 0
    %1300 = vperm.xlu0 %1299, %v1262
    %v1301 = vpop.permute.xlu0 %1300
    %v1303 = vmul.f32 %v1247, %v1266
    %v1304 = vmul.f32 %v1248, %v1271
    %v1305 = vmul.f32 %v1249, %v1276
    %v1306 = vmul.f32 %v1250, %v1281
    %v1307 = vmul.f32 %v1251, %v1286
    %v1308 = vmul.f32 %v1252, %v1291
    %v1309 = vmul.f32 %v1253, %v1296
    %v1310 = vmul.f32 %v1254, %v1301
    %v1311 = vld [vmem:[%s15] sm:$0xff]
    %v1312 = vld [vmem:[%s15 + $0x8] sm:$0xff]
    %v1313 = vld [vmem:[%s15 + $0x10] sm:$0xff]
    %v1314 = vld [vmem:[%s15 + $0x18] sm:$0xff]
    %v1315 = vld [vmem:[%s15 + $0x20] sm:$0xff]
    %v1316 = vld [vmem:[%s15 + $0x28] sm:$0xff]
    %v1317 = vld [vmem:[%s15 + $0x30] sm:$0xff]
    %v1318 = vld [vmem:[%s15 + $0x38] sm:$0xff]
    %1320 = vset.pattern.permute.xlu0 0
    %1321 = vperm.xlu0 %1320, %v1311
    %v1322 = vpop.permute.xlu0 %1321
    %1325 = vset.pattern.permute.xlu0 0
    %1326 = vperm.xlu0 %1325, %v1312
    %v1327 = vpop.permute.xlu0 %1326
    %1330 = vset.pattern.permute.xlu0 0
    %1331 = vperm.xlu0 %1330, %v1313
    %v1332 = vpop.permute.xlu0 %1331
    %1335 = vset.pattern.permute.xlu0 0
    %1336 = vperm.xlu0 %1335, %v1314
    %v1337 = vpop.permute.xlu0 %1336
    %1340 = vset.pattern.permute.xlu0 0
    %1341 = vperm.xlu0 %1340, %v1315
    %v1342 = vpop.permute.xlu0 %1341
    %1345 = vset.pattern.permute.xlu0 0
    %1346 = vperm.xlu0 %1345, %v1316
    %v1347 = vpop.permute.xlu0 %1346
    %1350 = vset.pattern.permute.xlu0 0
    %1351 = vperm.xlu0 %1350, %v1317
    %v1352 = vpop.permute.xlu0 %1351
    %1355 = vset.pattern.permute.xlu0 0
    %1356 = vperm.xlu0 %1355, %v1318
    %v1357 = vpop.permute.xlu0 %1356
    %v1359 = vadd.f32 %v1303, %v1322
    %v1360 = vadd.f32 %v1304, %v1327
    %v1361 = vadd.f32 %v1305, %v1332
    %v1362 = vadd.f32 %v1306, %v1337
    %v1363 = vadd.f32 %v1307, %v1342
    %v1364 = vadd.f32 %v1308, %v1347
    %v1365 = vadd.f32 %v1309, %v1352
    %v1366 = vadd.f32 %v1310, %v1357
    %v1367 = vxor.u32 %v1359, 2147483648
    %v1368 = vxor.u32 %v1360, 2147483648
    %v1369 = vxor.u32 %v1361, 2147483648
    %v1370 = vxor.u32 %v1362, 2147483648
    %v1371 = vxor.u32 %v1363, 2147483648
    %v1372 = vxor.u32 %v1364, 2147483648
    %v1373 = vxor.u32 %v1365, 2147483648
    %v1374 = vxor.u32 %v1366, 2147483648
    %v1375 = vmul.f32 %v1367, 1.442695
    %v1376 = vpow.pop %v1375
    %v1377 = vmul.f32 %v1368, 1.442695
    %v1378 = vpow.pop %v1377
    %v1379 = vmul.f32 %v1369, 1.442695
    %v1380 = vpow.pop %v1379
    %v1381 = vmul.f32 %v1370, 1.442695
    %v1382 = vpow.pop %v1381
    %v1383 = vmul.f32 %v1371, 1.442695
    %v1384 = vpow.pop %v1383
    %v1385 = vmul.f32 %v1372, 1.442695
    %v1386 = vpow.pop %v1385
    %v1387 = vmul.f32 %v1373, 1.442695
    %v1388 = vpow.pop %v1387
    %v1389 = vmul.f32 %v1374, 1.442695
    %v1390 = vpow.pop %v1389
    %v1391 = vadd.f32 %v1376, 1.0
    %v1392 = vadd.f32 %v1378, 1.0
    %v1393 = vadd.f32 %v1380, 1.0
    %v1394 = vadd.f32 %v1382, 1.0
    %v1395 = vadd.f32 %v1384, 1.0
    %v1396 = vadd.f32 %v1386, 1.0
    %v1397 = vadd.f32 %v1388, 1.0
    %v1398 = vadd.f32 %v1390, 1.0
    %v1399 = vrcp.pop %v1391
    %v1400 = vmul.f32 %v1391, %v1399
    %v1401 = vsub.f32 1.0, %v1400
    %v1402 = vmul.f32 %v1399, %v1401
    %v1403 = vadd.f32 %v1399, %v1402
    %vm1404 = vweird.f32 %v1391
    %vm1405 = vweird.f32 %v1399
    %vm1406 = vmor %vm1404, %vm1405
    %v1407 = vsel %vm1406, %v1399, %v1403
    %v1408 = vand.u32 2147483647, %v1391
    %vm1409 = vcmp.eq.f32.partialorder %v1408, 8.507059e+37
    %v1410 = vand.u32 %v1391, 2147483648
    %v1411 = vor.u32 1.1754944e-38, %v1410
    %v1412 = vsel %vm1409, %v1411, %v1407
    %v1413 = vmul.f32 1.0, %v1412
    %v1414 = vrcp.pop %v1392
    %v1415 = vmul.f32 %v1392, %v1414
    %v1416 = vsub.f32 1.0, %v1415
    %v1417 = vmul.f32 %v1414, %v1416
    %v1418 = vadd.f32 %v1414, %v1417
    %vm1419 = vweird.f32 %v1392
    %vm1420 = vweird.f32 %v1414
    %vm1421 = vmor %vm1419, %vm1420
    %v1422 = vsel %vm1421, %v1414, %v1418
    %v1423 = vand.u32 2147483647, %v1392
    %vm1424 = vcmp.eq.f32.partialorder %v1423, 8.507059e+37
    %v1425 = vand.u32 %v1392, 2147483648
    %v1426 = vor.u32 1.1754944e-38, %v1425
    %v1427 = vsel %vm1424, %v1426, %v1422
    %v1428 = vmul.f32 1.0, %v1427
    %v1429 = vrcp.pop %v1393
    %v1430 = vmul.f32 %v1393, %v1429
    %v1431 = vsub.f32 1.0, %v1430
    %v1432 = vmul.f32 %v1429, %v1431
    %v1433 = vadd.f32 %v1429, %v1432
    %vm1434 = vweird.f32 %v1393
    %vm1435 = vweird.f32 %v1429
    %vm1436 = vmor %vm1434, %vm1435
    %v1437 = vsel %vm1436, %v1429, %v1433
    %v1438 = vand.u32 2147483647, %v1393
    %vm1439 = vcmp.eq.f32.partialorder %v1438, 8.507059e+37
    %v1440 = vand.u32 %v1393, 2147483648
    %v1441 = vor.u32 1.1754944e-38, %v1440
    %v1442 = vsel %vm1439, %v1441, %v1437
    %v1443 = vmul.f32 1.0, %v1442
    %v1444 = vrcp.pop %v1394
    %v1445 = vmul.f32 %v1394, %v1444
    %v1446 = vsub.f32 1.0, %v1445
    %v1447 = vmul.f32 %v1444, %v1446
    %v1448 = vadd.f32 %v1444, %v1447
    %vm1449 = vweird.f32 %v1394
    %vm1450 = vweird.f32 %v1444
    %vm1451 = vmor %vm1449, %vm1450
    %v1452 = vsel %vm1451, %v1444, %v1448
    %v1453 = vand.u32 2147483647, %v1394
    %vm1454 = vcmp.eq.f32.partialorder %v1453, 8.507059e+37
    %v1455 = vand.u32 %v1394, 2147483648
    %v1456 = vor.u32 1.1754944e-38, %v1455
    %v1457 = vsel %vm1454, %v1456, %v1452
    %v1458 = vmul.f32 1.0, %v1457
    %v1459 = vrcp.pop %v1395
    %v1460 = vmul.f32 %v1395, %v1459
    %v1461 = vsub.f32 1.0, %v1460
    %v1462 = vmul.f32 %v1459, %v1461
    %v1463 = vadd.f32 %v1459, %v1462
    %vm1464 = vweird.f32 %v1395
    %vm1465 = vweird.f32 %v1459
    %vm1466 = vmor %vm1464, %vm1465
    %v1467 = vsel %vm1466, %v1459, %v1463
    %v1468 = vand.u32 2147483647, %v1395
    %vm1469 = vcmp.eq.f32.partialorder %v1468, 8.507059e+37
    %v1470 = vand.u32 %v1395, 2147483648
    %v1471 = vor.u32 1.1754944e-38, %v1470
    %v1472 = vsel %vm1469, %v1471, %v1467
    %v1473 = vmul.f32 1.0, %v1472
    %v1474 = vrcp.pop %v1396
    %v1475 = vmul.f32 %v1396, %v1474
    %v1476 = vsub.f32 1.0, %v1475
    %v1477 = vmul.f32 %v1474, %v1476
    %v1478 = vadd.f32 %v1474, %v1477
    %vm1479 = vweird.f32 %v1396
    %vm1480 = vweird.f32 %v1474
    %vm1481 = vmor %vm1479, %vm1480
    %v1482 = vsel %vm1481, %v1474, %v1478
    %v1483 = vand.u32 2147483647, %v1396
    %vm1484 = vcmp.eq.f32.partialorder %v1483, 8.507059e+37
    %v1485 = vand.u32 %v1396, 2147483648
    %v1486 = vor.u32 1.1754944e-38, %v1485
    %v1487 = vsel %vm1484, %v1486, %v1482
    %v1488 = vmul.f32 1.0, %v1487
    %v1489 = vrcp.pop %v1397
    %v1490 = vmul.f32 %v1397, %v1489
    %v1491 = vsub.f32 1.0, %v1490
    %v1492 = vmul.f32 %v1489, %v1491
    %v1493 = vadd.f32 %v1489, %v1492
    %vm1494 = vweird.f32 %v1397
    %vm1495 = vweird.f32 %v1489
    %vm1496 = vmor %vm1494, %vm1495
    %v1497 = vsel %vm1496, %v1489, %v1493
    %v1498 = vand.u32 2147483647, %v1397
    %vm1499 = vcmp.eq.f32.partialorder %v1498, 8.507059e+37
    %v1500 = vand.u32 %v1397, 2147483648
    %v1501 = vor.u32 1.1754944e-38, %v1500
    %v1502 = vsel %vm1499, %v1501, %v1497
    %v1503 = vmul.f32 1.0, %v1502
    %v1504 = vrcp.pop %v1398
    %v1505 = vmul.f32 %v1398, %v1504
    %v1506 = vsub.f32 1.0, %v1505
    %v1507 = vmul.f32 %v1504, %v1506
    %v1508 = vadd.f32 %v1504, %v1507
    %vm1509 = vweird.f32 %v1398
    %vm1510 = vweird.f32 %v1504
    %vm1511 = vmor %vm1509, %vm1510
    %v1512 = vsel %vm1511, %v1504, %v1508
    %v1513 = vand.u32 2147483647, %v1398
    %vm1514 = vcmp.eq.f32.partialorder %v1513, 8.507059e+37
    %v1515 = vand.u32 %v1398, 2147483648
    %v1516 = vor.u32 1.1754944e-38, %v1515
    %v1517 = vsel %vm1514, %v1516, %v1512
    %v1518 = vmul.f32 1.0, %v1517
    %v1519 = vmul.f32 %v1359, %v1413
    %v1520 = vmul.f32 %v1360, %v1428
    %v1521 = vmul.f32 %v1361, %v1443
    %v1522 = vmul.f32 %v1362, %v1458
    %v1523 = vmul.f32 %v1363, %v1473
    %v1524 = vmul.f32 %v1364, %v1488
    %v1525 = vmul.f32 %v1365, %v1503
    %v1526 = vmul.f32 %v1366, %v1518
    %v1527 = vld [vmem:[%s16] sm:$0xff]
    %v1528 = vld [vmem:[%s16 + $0x8] sm:$0xff]
    %v1529 = vld [vmem:[%s16 + $0x10] sm:$0xff]
    %v1530 = vld [vmem:[%s16 + $0x18] sm:$0xff]
    %v1531 = vld [vmem:[%s16 + $0x20] sm:$0xff]
    %v1532 = vld [vmem:[%s16 + $0x28] sm:$0xff]
    %v1533 = vld [vmem:[%s16 + $0x30] sm:$0xff]
    %v1534 = vld [vmem:[%s16 + $0x38] sm:$0xff]
    %1535 = vrot.lane.b32.xlu0 %v1519, 1
    %v1536 = vpop.permute.xlu0 %1535
    %1537 = vrot.lane.b32.xlu0 %v1520, 1
    %v1538 = vpop.permute.xlu0 %1537
    %1539 = vrot.lane.b32.xlu0 %v1521, 1
    %v1540 = vpop.permute.xlu0 %1539
    %1541 = vrot.lane.b32.xlu0 %v1522, 1
    %v1542 = vpop.permute.xlu0 %1541
    %1543 = vrot.lane.b32.xlu0 %v1523, 1
    %v1544 = vpop.permute.xlu0 %1543
    %1545 = vrot.lane.b32.xlu0 %v1524, 1
    %v1546 = vpop.permute.xlu0 %1545
    %1547 = vrot.lane.b32.xlu0 %v1525, 1
    %v1548 = vpop.permute.xlu0 %1547
    %1549 = vrot.lane.b32.xlu0 %v1526, 1
    %v1550 = vpop.permute.xlu0 %1549
    %v1551 = vmul.f32 %v1536, %v579
    %v1552 = vmul.f32 %v1538, %v579
    %v1553 = vmul.f32 %v1540, %v579
    %v1554 = vmul.f32 %v1542, %v579
    %v1555 = vmul.f32 %v1544, %v579
    %v1556 = vmul.f32 %v1546, %v579
    %v1557 = vmul.f32 %v1548, %v579
    %v1558 = vmul.f32 %v1550, %v579
    %v1559 = vpack.c.bf16 %v1551, %v1551
    %v1560 = vpack.c.bf16 %v1552, %v1552
    %v1561 = vpack.c.bf16 %v1553, %v1553
    %v1562 = vpack.c.bf16 %v1554, %v1554
    %v1563 = vpack.c.bf16 %v1555, %v1555
    %v1564 = vpack.c.bf16 %v1556, %v1556
    %v1565 = vpack.c.bf16 %v1557, %v1557
    %v1566 = vpack.c.bf16 %v1558, %v1558
    %1567 = vrot.lane.b32.xlu0 %v1519, 127
    %v1568 = vpop.permute.xlu0 %1567
    %1569 = vrot.lane.b32.xlu0 %v1520, 127
    %v1570 = vpop.permute.xlu0 %1569
    %1571 = vrot.lane.b32.xlu0 %v1521, 127
    %v1572 = vpop.permute.xlu0 %1571
    %1573 = vrot.lane.b32.xlu0 %v1522, 127
    %v1574 = vpop.permute.xlu0 %1573
    %1575 = vrot.lane.b32.xlu0 %v1523, 127
    %v1576 = vpop.permute.xlu0 %1575
    %1577 = vrot.lane.b32.xlu0 %v1524, 127
    %v1578 = vpop.permute.xlu0 %1577
    %1579 = vrot.lane.b32.xlu0 %v1525, 127
    %v1580 = vpop.permute.xlu0 %1579
    %1581 = vrot.lane.b32.xlu0 %v1526, 127
    %v1582 = vpop.permute.xlu0 %1581
    %v1583 = vmul.f32 %v1568, %v598
    %v1584 = vmul.f32 %v1570, %v598
    %v1585 = vmul.f32 %v1572, %v598
    %v1586 = vmul.f32 %v1574, %v598
    %v1587 = vmul.f32 %v1576, %v598
    %v1588 = vmul.f32 %v1578, %v598
    %v1589 = vmul.f32 %v1580, %v598
    %v1590 = vmul.f32 %v1582, %v598
    %v1591 = vpack.c.bf16 %v1583, %v1583
    %v1592 = vpack.c.bf16 %v1584, %v1584
    %v1593 = vpack.c.bf16 %v1585, %v1585
    %v1594 = vpack.c.bf16 %v1586, %v1586
    %v1595 = vpack.c.bf16 %v1587, %v1587
    %v1596 = vpack.c.bf16 %v1588, %v1588
    %v1597 = vpack.c.bf16 %v1589, %v1589
    %v1598 = vpack.c.bf16 %v1590, %v1590
    %v1599 = vpack.c.bf16 %v1519, %v1519
    %v1600 = vpack.c.bf16 %v1520, %v1520
    %v1601 = vpack.c.bf16 %v1521, %v1521
    %v1602 = vpack.c.bf16 %v1522, %v1522
    %v1603 = vpack.c.bf16 %v1523, %v1523
    %v1604 = vpack.c.bf16 %v1524, %v1524
    %v1605 = vpack.c.bf16 %v1525, %v1525
    %v1606 = vpack.c.bf16 %v1526, %v1526
    %v1607 = vpack.c.bf16 %v61, %v61
    %v1608 = vpack.c.bf16 %v62, %v62
    %v1609 = vpack.c.bf16 %v63, %v63
    %v1610 = vpack.c.bf16 %v64, %v64
    %v1619 = vunpack.c.l.b16 %v1559
    %v1620 = vunpack.c.l.b16 %v1560
    %v1621 = vunpack.c.l.b16 %v1561
    %v1622 = vunpack.c.l.b16 %v1562
    %v1623 = vunpack.c.l.b16 %v1563
    %v1624 = vunpack.c.l.b16 %v1564
    %v1625 = vunpack.c.l.b16 %v1565
    %v1626 = vunpack.c.l.b16 %v1566
    %v1627 = vpack.c.b16 %v1620, %v1619
    %v1628 = vpack.c.b16 %v1622, %v1621
    %v1629 = vpack.c.b16 %v1624, %v1623
    %v1630 = vpack.c.b16 %v1626, %v1625
    %v1643 = vunpack.c.l.b16 %v1599
    %v1644 = vunpack.c.l.b16 %v1600
    %v1645 = vunpack.c.l.b16 %v1601
    %v1646 = vunpack.c.l.b16 %v1602
    %v1647 = vunpack.c.l.b16 %v1603
    %v1648 = vunpack.c.l.b16 %v1604
    %v1649 = vunpack.c.l.b16 %v1605
    %v1650 = vunpack.c.l.b16 %v1606
    %v1651 = vpack.c.b16 %v1644, %v1643
    %v1652 = vpack.c.b16 %v1646, %v1645
    %v1653 = vpack.c.b16 %v1648, %v1647
    %v1654 = vpack.c.b16 %v1650, %v1649
    %v1667 = vunpack.c.l.b16 %v1591
    %v1668 = vunpack.c.l.b16 %v1592
    %v1669 = vunpack.c.l.b16 %v1593
    %v1670 = vunpack.c.l.b16 %v1594
    %v1671 = vunpack.c.l.b16 %v1595
    %v1672 = vunpack.c.l.b16 %v1596
    %v1673 = vunpack.c.l.b16 %v1597
    %v1674 = vunpack.c.l.b16 %v1598
    %v1675 = vpack.c.b16 %v1668, %v1667
    %v1676 = vpack.c.b16 %v1670, %v1669
    %v1677 = vpack.c.b16 %v1672, %v1671
    %v1678 = vpack.c.b16 %v1674, %v1673
    %v1687 = vunpack.c.l.b16 %v1607
    %v1688 = vunpack.c.l.b16 %v1608
    %v1689 = vunpack.c.l.b16 %v1609
    %v1690 = vunpack.c.l.b16 %v1610
    %v1691 = vpack.c.b16 %v1688, %v1687
    %v1692 = vpack.c.b16 %v1690, %v1689
    %v1695 = vld [vmem:[%s17] sm:$0xff]
    %v1696 = vld [vmem:[%s17 + $0x8] sm:$0xff]
    %v1697 = vld [vmem:[%s17 + $0x10] sm:$0xff]
    %v1698 = vld [vmem:[%s17 + $0x18] sm:$0xff]
    %v1699 = vld [vmem:[%s17 + $0x20] sm:$0xff]
    %v1700 = vld [vmem:[%s17 + $0x28] sm:$0xff]
    %v1701 = vld [vmem:[%s17 + $0x30] sm:$0xff]
    %v1702 = vld [vmem:[%s17 + $0x38] sm:$0xff]
    %1704 = vset.pattern.permute.xlu0 0
    %1705 = vperm.xlu0 %1704, %v1695
    %v1706 = vpop.permute.xlu0 %1705
    %1709 = vset.pattern.permute.xlu0 0
    %1710 = vperm.xlu0 %1709, %v1696
    %v1711 = vpop.permute.xlu0 %1710
    %1714 = vset.pattern.permute.xlu0 0
    %1715 = vperm.xlu0 %1714, %v1697
    %v1716 = vpop.permute.xlu0 %1715
    %1719 = vset.pattern.permute.xlu0 0
    %1720 = vperm.xlu0 %1719, %v1698
    %v1721 = vpop.permute.xlu0 %1720
    %1724 = vset.pattern.permute.xlu0 0
    %1725 = vperm.xlu0 %1724, %v1699
    %v1726 = vpop.permute.xlu0 %1725
    %1729 = vset.pattern.permute.xlu0 0
    %1730 = vperm.xlu0 %1729, %v1700
    %v1731 = vpop.permute.xlu0 %1730
    %1734 = vset.pattern.permute.xlu0 0
    %1735 = vperm.xlu0 %1734, %v1701
    %v1736 = vpop.permute.xlu0 %1735
    %1739 = vset.pattern.permute.xlu0 0
    %1740 = vperm.xlu0 %1739, %v1702
    %v1741 = vpop.permute.xlu0 %1740
    %v1751 = vunpack.c.l.b16 %v1527
    %v1752 = vunpack.c.h.b16 %v1527
    %v1753 = vunpack.c.l.b16 %v1528
    %v1754 = vunpack.c.h.b16 %v1528
    %v1755 = vunpack.c.l.b16 %v1529
    %v1756 = vunpack.c.h.b16 %v1529
    %v1757 = vunpack.c.l.b16 %v1530
    %v1758 = vunpack.c.h.b16 %v1530
    %v1759 = vunpack.c.l.b16 %v1531
    %v1760 = vunpack.c.h.b16 %v1531
    %v1761 = vunpack.c.l.b16 %v1532
    %v1762 = vunpack.c.h.b16 %v1532
    %v1763 = vunpack.c.l.b16 %v1533
    %v1764 = vunpack.c.h.b16 %v1533
    %v1765 = vunpack.c.l.b16 %v1534
    %v1766 = vunpack.c.h.b16 %v1534
    %v1767 = vpack.c.b16 %v1753, %v1751
    %v1768 = vpack.c.b16 %v1754, %v1752
    %v1769 = vpack.c.b16 %v1757, %v1755
    %v1770 = vpack.c.b16 %v1758, %v1756
    %v1771 = vpack.c.b16 %v1761, %v1759
    %v1772 = vpack.c.b16 %v1762, %v1760
    %v1773 = vpack.c.b16 %v1765, %v1763
    %v1774 = vpack.c.b16 %v1766, %v1764
    %v1780 = vsel %vm716, %v1768, 0
    %v1783 = vsel %vm716, %v1770, 0
    %v1786 = vsel %vm716, %v1772, 0
    %v1789 = vsel %vm716, %v1774, 0
    %1791 = vmatpush.bf16.msra.mxu0 %v1654
    %1792 = vmatpush.bf16.msra.mxu0 %v1653
    %1793 = vmatpush.bf16.msra.mxu0 %v1652
    %1794 = vmatpush.bf16.msra.mxu0 %v1651
    %1795 = vmatpush.bf16.msra.mxu0 %v1630
    %1796 = vmatpush.bf16.msra.mxu0 %v1629
    %1797 = vmatpush.bf16.msra.mxu0 %v1628
    %1798 = vmatpush.bf16.msra.mxu0 %v1627
    %1799 = vmatmul.bf16.gmra.mxu0 %v1767
    %v1800 = vpop.f32.mrf.mxu0
    %v1801 = vadd.f32 %v1706, %v1800
    %v1802 = vpop.f32.mrf.mxu0
    %v1803 = vadd.f32 %v1711, %v1802
    %1804 = vmatmul.bf16.gmra.mxu0 %v1769
    %v1805 = vpop.f32.mrf.mxu0
    %v1806 = vadd.f32 %v1716, %v1805
    %v1807 = vpop.f32.mrf.mxu0
    %v1808 = vadd.f32 %v1721, %v1807
    %1809 = vmatmul.bf16.gmra.mxu0 %v1771
    %v1810 = vpop.f32.mrf.mxu0
    %v1811 = vadd.f32 %v1726, %v1810
    %v1812 = vpop.f32.mrf.mxu0
    %v1813 = vadd.f32 %v1731, %v1812
    %1814 = vmatmul.bf16.gmra.mxu0 %v1773
    %v1815 = vpop.f32.mrf.mxu0
    %v1816 = vadd.f32 %v1736, %v1815
    %v1817 = vpop.f32.mrf.mxu0
    %v1818 = vadd.f32 %v1741, %v1817
    %1819 = vdwg.mxu0
    %1820 = vmatpush.bf16.msra.mxu0 0
    %1821 = vmatpush.bf16.msra.mxu0 0
    %1822 = vmatpush.bf16.msra.mxu0 %v1692
    %1823 = vmatpush.bf16.msra.mxu0 %v1691
    %1824 = vmatpush.bf16.msra.mxu0 %v1678
    %1825 = vmatpush.bf16.msra.mxu0 %v1677
    %1826 = vmatpush.bf16.msra.mxu0 %v1676
    %1827 = vmatpush.bf16.msra.mxu0 %v1675
    %1828 = vmatmul.bf16.gmra.mxu0 %v1780
    %v1829 = vpop.f32.mrf.mxu0
    %v1830 = vadd.f32 %v1801, %v1829
    %v1831 = vpop.f32.mrf.mxu0
    %v1832 = vadd.f32 %v1803, %v1831
    %1833 = vmatmul.bf16.gmra.mxu0 %v1783
    %v1834 = vpop.f32.mrf.mxu0
    %v1835 = vadd.f32 %v1806, %v1834
    %v1836 = vpop.f32.mrf.mxu0
    %v1837 = vadd.f32 %v1808, %v1836
    %1838 = vmatmul.bf16.gmra.mxu0 %v1786
    %v1839 = vpop.f32.mrf.mxu0
    %v1840 = vadd.f32 %v1811, %v1839
    %v1841 = vpop.f32.mrf.mxu0
    %v1842 = vadd.f32 %v1813, %v1841
    %1843 = vmatmul.bf16.gmra.mxu0 %v1789
    %v1844 = vpop.f32.mrf.mxu0
    %v1845 = vadd.f32 %v1816, %v1844
    %v1846 = vpop.f32.mrf.mxu0
    %v1847 = vadd.f32 %v1818, %v1846
    %1848 = vdwg.mxu0
    %1849 = vst [vmem:[#allocation2] sm:$0xff] %v1830
    %1850 = vst [vmem:[#allocation2 + $0x8] sm:$0xff] %v1832
    %1851 = vst [vmem:[#allocation2 + $0x10] sm:$0xff] %v1835
    %1852 = vst [vmem:[#allocation2 + $0x18] sm:$0xff] %v1837
    %1853 = vst [vmem:[#allocation2 + $0x20] sm:$0xff] %v1840
    %1854 = vst [vmem:[#allocation2 + $0x28] sm:$0xff] %v1842
    %1855 = vst [vmem:[#allocation2 + $0x30] sm:$0xff] %v1845
    %1856 = vst [vmem:[#allocation2 + $0x38] sm:$0xff] %v1847
    // Predicated region
    $region74: #{tpu_custom_call.1} parent=1 // pred_check
      _
    $region75: #{tpu_custom_call.1} parent=1 // pred_check_branch
      %1858 = sbr.rel (0) target = $region77
    $region76: #{tpu_custom_call.1} parent=1 // pred_region
      %1860 = vsyncadd [#allocation3], 0
      %s1861 = sshll.u32 [#allocation2], 4
      %s1862 = int_to_ptr.vmem [resolvable:$true] %s1861
      %s1863 = sshll.u32 %s18, 4
      %s1864 = int_to_ptr.hbm [resolvable:$true] %s1863
      %1869 = dma.vmem_to_hbm [thread:$0]  %s1862, 1024, %s1864, [#allocation3], 128, 128, 8
    $region77: #{tpu_custom_call.1} parent=1 // pred_fallthru
      _
    // Predicated region
    $region78: #{tpu_custom_call.1} parent=1 // pred_check
      _
    $region79: #{tpu_custom_call.1} parent=1 // pred_check_branch
      %1871 = sbr.rel (0) target = $region81
    $region80: #{tpu_custom_call.1} parent=1 // pred_region
      %1873 = dma.done [#allocation3], 1024
    $region81: #{tpu_custom_call.1} parent=1 // pred_fallthru
      _
    %1874 = vsyncpa [#allocation3], 1

</llo_original>
